<compile_context>
chip_gen: v6e
topology: v6e:2x2x1
jax: 0.10.0
libtpu: 0.0.40
codegen_flags: <defaults>
</compile_context>

<pallas_src>
import functools

import jax
import jax.numpy as jnp
from jax.experimental import pallas as pl
from jax.experimental.pallas import tpu as pltpu

_LANE = 128


def _round_up(n, m):
    return ((n + m - 1) // m) * m


def _physical_vmem_bytes():
    try:
        info = pltpu.get_tpu_info()
        return int(getattr(info, "vmem_capacity_bytes", 64 * 1024 * 1024))
    except Exception:
        return 64 * 1024 * 1024


def erm_forward_kernel(x_ref, w_in_ref, b_in_ref, *rest, n_hidden):
    if n_hidden > 0:
        (w_hid_ref, b_hid_ref, w_feat_ref, b_feat_ref,
         w_cls_ref, b_cls_ref, o_ref) = rest
    else:
        (w_feat_ref, b_feat_ref, w_cls_ref, b_cls_ref, o_ref) = rest

    # Input layer: bf16 matmul on MXU, f32 accumulate; bias + ReLU in f32,
    # then carry the activation in bf16 (halves live / spill footprint).
    x = x_ref[...].astype(jnp.bfloat16)
    h = jnp.dot(x, w_in_ref[...], preferred_element_type=jnp.float32)
    h = jnp.maximum(h + b_in_ref[...], 0.0).astype(jnp.bfloat16)

    # Hidden layers: bounded fori_loop, dynamic index into stacked weights.
    if n_hidden > 0:
        def body(l, h):
            z = jnp.dot(h, w_hid_ref[l], preferred_element_type=jnp.float32)
            return jnp.maximum(z + b_hid_ref[l], 0.0).astype(jnp.bfloat16)
        h = jax.lax.fori_loop(0, n_hidden, body, h, unroll=True)

    # Featurizer output layer: Linear (no activation in DomainBed MLP).
    feat = jnp.dot(h, w_feat_ref[...],
                   preferred_element_type=jnp.float32) + b_feat_ref[...]

    # Linear classifier -> logits.
    logits = jnp.dot(feat.astype(jnp.bfloat16), w_cls_ref[...],
                     preferred_element_type=jnp.float32) + b_cls_ref[...]
    o_ref[...] = logits.astype(o_ref.dtype)


def erm_forward(x, params, *, tm=512):
    """x: (B, n_inputs) float32. params: dict of pre-transposed f32 weights."""
    B, n_inputs = x.shape
    W = params["w_in"].shape[1]
    num_classes = params["w_cls"].shape[1]
    n_hidden = params["w_hid"].shape[0]

    w_p = _round_up(W, _LANE)
    cls_p = _round_up(num_classes, _LANE)

    # ---- batch tiling ----
    tm_eff = min(tm, _round_up(B, _LANE))
    if B >= 2 * _LANE:
        # Guarantee >= 2 grid steps so the "parallel" batch axis can shard
        # across the two TensorCores on v7x.
        tm_eff = min(tm_eff, _round_up(pl.cdiv(B, 2), _LANE))
    grid_m = pl.cdiv(B, tm_eff)
    b_out = grid_m * tm_eff

    # ---- lane-pad weights / biases (exact: zero pads contribute 0, ReLU(0)=0) ----
    w_in = jnp.pad(params["w_in"], ((0, 0), (0, w_p - W))).astype(jnp.bfloat16)
    b_in = jnp.pad(params["b_in"], ((0, 0), (0, w_p - W))).astype(jnp.float32)
    w_feat = jnp.pad(params["w_feat"],
                     ((0, w_p - W), (0, w_p - W))).astype(jnp.bfloat16)
    b_feat = jnp.pad(params["b_feat"], ((0, 0), (0, w_p - W))).astype(jnp.float32)
    w_cls = jnp.pad(params["w_cls"],
                    ((0, w_p - W), (0, cls_p - num_classes))).astype(jnp.bfloat16)
    b_cls = jnp.pad(params["b_cls"],
                    ((0, 0), (0, cls_p - num_classes))).astype(jnp.float32)
    if n_hidden > 0:
        w_hid = jnp.pad(params["w_hid"],
                        ((0, 0), (0, w_p - W), (0, w_p - W))).astype(jnp.bfloat16)
        b_hid = jnp.pad(params["b_hid"],
                        ((0, 0), (0, 0), (0, w_p - W))).astype(jnp.float32)

    # ---- derived VMEM budget ----
    weight_vmem = ((w_in.size + w_feat.size + w_cls.size) * 2
                   + (b_in.size + b_feat.size + b_cls.size) * 4)
    if n_hidden > 0:
        weight_vmem += w_hid.size * 2 + b_hid.size * 4
    stream_vmem = 2 * (tm_eff * n_inputs * 4 + tm_eff * cls_p * 4)  # dbl-buffered x/out tiles
    act_vmem = 6 * tm_eff * w_p * 4                                  # live activations / headroom
    phys_vmem = _physical_vmem_bytes()

    flops = 2 * b_out * (n_inputs * w_p + (n_hidden + 1) * w_p * w_p + w_p * cls_p)
    bytes_accessed = B * n_inputs * 4 + weight_vmem + b_out * cls_p * 4
    cost = pl.CostEstimate(flops=int(flops), transcendentals=0,
                           bytes_accessed=int(bytes_accessed))

    def build_and_call(single_buffer_weights):
        def resident(shape):
            nd = len(shape)
            if single_buffer_weights:
                # Constant index_map -> block never changes; single buffer
                # halves resident-weight VMEM (matters most under v7x 64 MiB).
                return pl.BlockSpec(shape, lambda *_: (0,) * nd,
                                    pipeline_mode=pl.Buffered(1))
            return pl.BlockSpec(shape, lambda *_: (0,) * nd)

        in_specs = [pl.BlockSpec((tm_eff, n_inputs), lambda i: (i, 0)),
                    resident((n_inputs, w_p)),
                    resident((1, w_p))]
        args = [x, w_in, b_in]
        if n_hidden > 0:
            in_specs += [resident((n_hidden, w_p, w_p)),
                         resident((n_hidden, 1, w_p))]
            args += [w_hid, b_hid]
        in_specs += [resident((w_p, w_p)), resident((1, w_p)),
                     resident((w_p, cls_p)), resident((1, cls_p))]
        args += [w_feat, b_feat, w_cls, b_cls]

        wbuf = 1 if single_buffer_weights else 2
        vmem_need = wbuf * weight_vmem + stream_vmem + act_vmem + (8 << 20)
        vmem_limit = int(min(max(vmem_need, 32 << 20), int(0.75 * phys_vmem)))

        out = pl.pallas_call(
            functools.partial(erm_forward_kernel, n_hidden=n_hidden),
            out_shape=jax.ShapeDtypeStruct((b_out, cls_p), jnp.float32),
            grid_spec=pltpu.PrefetchScalarGridSpec(
                num_scalar_prefetch=0,
                grid=(grid_m,),
                in_specs=in_specs,
                out_specs=pl.BlockSpec((tm_eff, cls_p), lambda i: (i, 0)),
            ),
            compiler_params=pltpu.CompilerParams(
                dimension_semantics=("parallel",),  # batch axis shards across TCs (v7x)
                vmem_limit_bytes=vmem_limit,
            ),
            cost_estimate=cost,
        )(*args)
        return jax.block_until_ready(out)

    try:
        out = build_and_call(True)          # single-buffered resident weights
    except Exception:
        out = build_and_call(False)         # fallback: default double-buffering

    # Rows >= B of the padded output correspond to the ragged last tile's
    # garbage input rows; they must never be consumed (sliced off here).
    return out[:B, :num_classes]


def _linear_params(key, fan_in, fan_out):
    """PyTorch nn.Linear default init: U(-1/sqrt(fan_in), 1/sqrt(fan_in)).
    Returns weight already transposed to (fan_in, fan_out)."""
    kw, kb = jax.random.split(key)
    bound = 1.0 / jnp.sqrt(jnp.float32(fan_in))
    w = jax.random.uniform(kw, (fan_in, fan_out), jnp.float32, -bound, bound)
    b = jax.random.uniform(kb, (1, fan_out), jnp.float32, -bound, bound)
    return w, b


def init_erm_params(key, n_inputs, mlp_width, mlp_depth, num_classes):
    keys = jax.random.split(key, mlp_depth + 1)
    n_hidden = mlp_depth - 2

    w_in, b_in = _linear_params(keys[0], n_inputs, mlp_width)

    w_hid_list, b_hid_list = [], []
    for l in range(n_hidden):
        w, b = _linear_params(keys[1 + l], mlp_width, mlp_width)
        w_hid_list.append(w)
        b_hid_list.append(b)
    w_hid = (jnp.stack(w_hid_list, axis=0) if n_hidden > 0
             else jnp.zeros((0, mlp_width, mlp_width), jnp.float32))
    b_hid = (jnp.stack(b_hid_list, axis=0) if n_hidden > 0
             else jnp.zeros((0, 1, mlp_width), jnp.float32))

    w_feat, b_feat = _linear_params(keys[1 + n_hidden], mlp_width, mlp_width)
    w_cls, b_cls = _linear_params(keys[mlp_depth], mlp_width, num_classes)

    return {
        "w_in": w_in, "b_in": b_in,
        "w_hid": w_hid, "b_hid": b_hid,
        "w_feat": w_feat, "b_feat": b_feat,
        "w_cls": w_cls, "b_cls": b_cls,
    }


def erm_forward_ref(x, params):
    """Pure-JAX reference using the same bf16-input / f32-accumulate scheme."""
    def lin(h, w, b):
        return jnp.dot(h.astype(jnp.bfloat16), w.astype(jnp.bfloat16),
                       preferred_element_type=jnp.float32) + b
    h = jnp.maximum(lin(x, params["w_in"], params["b_in"]), 0.0)
    for l in range(params["w_hid"].shape[0]):
        h = jnp.maximum(lin(h, params["w_hid"][l], params["b_hid"][l]), 0.0)
    feat = lin(h, params["w_feat"], params["b_feat"])
    return lin(feat, params["w_cls"], params["b_cls"])


if __name__ == "__main__":
    # Small, module-consistent shapes:
    #   input_shape = (32,)  -> MLP featurizer branch
    #   hparams: mlp_width=64, mlp_depth=3, nonlinear_classifier=False
    #   num_classes = 8, batch = 8
    B, N_INPUTS, MLP_WIDTH, MLP_DEPTH, NUM_CLASSES = 8, 32, 64, 3, 8

    key = jax.random.PRNGKey(0)
    k_x, k_p, k_x2 = jax.random.split(key, 3)
    x = jax.random.normal(k_x, (B, N_INPUTS), jnp.float32)
    params = init_erm_params(k_p, N_INPUTS, MLP_WIDTH, MLP_DEPTH, NUM_CLASSES)

    logits = jax.block_until_ready(erm_forward(x, params))
    ref = erm_forward_ref(x, params)
    assert logits.shape == (B, NUM_CLASSES)
    assert jnp.allclose(logits, ref, atol=5e-3, rtol=5e-3), (
        float(jnp.max(jnp.abs(logits - ref))))

    # Second check: a ragged multi-tile batch exercises the >=2-step grid
    # (megacore path on v7x) and the masked last batch tile.
    B2 = 300
    x2 = jax.random.normal(k_x2, (B2, N_INPUTS), jnp.float32)
    logits2 = jax.block_until_ready(erm_forward(x2, params))
    ref2 = erm_forward_ref(x2, params)
    assert logits2.shape == (B2, NUM_CLASSES)
    assert jnp.allclose(logits2, ref2, atol=5e-3, rtol=5e-3), (
        float(jnp.max(jnp.abs(logits2 - ref2))))

    print("KERNEL_OK")
</pallas_src>

<mosaic_0001>
module attributes {stable_mosaic.version = 11 : i64} {
  func.func @erm_forward_kernel(%arg0: i32, %arg1: memref<128x32xf32, #tpu.memory_space<vmem>>, %arg2: memref<32x128xbf16, #tpu.memory_space<vmem>>, %arg3: memref<1x128xf32, #tpu.memory_space<vmem>>, %arg4: memref<1x128x128xbf16, #tpu.memory_space<vmem>>, %arg5: memref<1x1x128xf32, #tpu.memory_space<vmem>>, %arg6: memref<128x128xbf16, #tpu.memory_space<vmem>>, %arg7: memref<1x128xf32, #tpu.memory_space<vmem>>, %arg8: memref<128x128xbf16, #tpu.memory_space<vmem>>, %arg9: memref<1x128xf32, #tpu.memory_space<vmem>>, %arg10: memref<128x128xf32, #tpu.memory_space<vmem>>) attributes {dimension_semantics = [#tpu.dimension_semantics<parallel>], iteration_bounds = array<i64: 1>, scalar_prefetch = 0 : i64, scratch_operands = 0 : i64, tpu.core_type = #tpu.core_type<tc>, window_params = [{transform_indices = @transform_0, window_bounds = array<i64: 128, 32>}, {pipeline_mode = #tpu.pipeline_mode<synchronous>, transform_indices = @transform_1, window_bounds = array<i64: 32, 128>}, {pipeline_mode = #tpu.pipeline_mode<synchronous>, transform_indices = @transform_2, window_bounds = array<i64: 1, 128>}, {pipeline_mode = #tpu.pipeline_mode<synchronous>, transform_indices = @transform_3, window_bounds = array<i64: 1, 128, 128>}, {pipeline_mode = #tpu.pipeline_mode<synchronous>, transform_indices = @transform_4, window_bounds = array<i64: 1, 1, 128>}, {pipeline_mode = #tpu.pipeline_mode<synchronous>, transform_indices = @transform_5, window_bounds = array<i64: 128, 128>}, {pipeline_mode = #tpu.pipeline_mode<synchronous>, transform_indices = @transform_6, window_bounds = array<i64: 1, 128>}, {pipeline_mode = #tpu.pipeline_mode<synchronous>, transform_indices = @transform_7, window_bounds = array<i64: 128, 128>}, {pipeline_mode = #tpu.pipeline_mode<synchronous>, transform_indices = @transform_8, window_bounds = array<i64: 1, 128>}, {transform_indices = @transform_9, window_bounds = array<i64: 128, 128>}]} {
    %c0 = arith.constant 0 : index
    %c0_0 = arith.constant 0 : index
    %0 = vector.load %arg1[%c0, %c0_0] : memref<128x32xf32, #tpu.memory_space<vmem>>, vector<128x32xf32>
    %1 = arith.truncf %0 : vector<128x32xf32> to vector<128x32xbf16>
    %c0_1 = arith.constant 0 : index
    %c0_2 = arith.constant 0 : index
    %2 = vector.load %arg2[%c0_1, %c0_2] : memref<32x128xbf16, #tpu.memory_space<vmem>>, vector<32x128xbf16>
    %cst = arith.constant dense<0.000000e+00> : vector<128x128xf32>
    %3 = tpu.matmul %1, %2, %cst {dimension_numbers = #tpu.dot_dimension_numbers<[1], [0], [0], [1], [0, 0, 1, 1], [], []>} : vector<128x32xbf16>, vector<32x128xbf16>, vector<128x128xf32> -> vector<128x128xf32>
    %c0_3 = arith.constant 0 : index
    %c0_4 = arith.constant 0 : index
    %4 = vector.load %arg3[%c0_3, %c0_4] : memref<1x128xf32, #tpu.memory_space<vmem>>, vector<1x128xf32>
    %5 = vector.broadcast %4 : vector<1x128xf32> to vector<128x128xf32>
    %6 = arith.addf %3, %5 : vector<128x128xf32>
    %cst_5 = arith.constant 0.000000e+00 : f32
    %7 = vector.broadcast %cst_5 : f32 to vector<128x128xf32>
    %8 = arith.maximumf %6, %7 : vector<128x128xf32>
    %9 = arith.truncf %8 : vector<128x128xf32> to vector<128x128xbf16>
    %c0_i32 = arith.constant 0 : i32
    %10 = arith.index_cast %c0_i32 : i32 to index
    %c0_6 = arith.constant 0 : index
    %c0_7 = arith.constant 0 : index
    %11 = vector.load %arg4[%10, %c0_6, %c0_7] : memref<1x128x128xbf16, #tpu.memory_space<vmem>>, vector<1x128x128xbf16>
    %12 = vector.shape_cast %11 : vector<1x128x128xbf16> to vector<128x128xbf16>
    %cst_8 = arith.constant dense<0.000000e+00> : vector<128x128xf32>
    %13 = tpu.matmul %9, %12, %cst_8 {dimension_numbers = #tpu.dot_dimension_numbers<[1], [0], [0], [1], [0, 0, 1, 1], [], []>} : vector<128x128xbf16>, vector<128x128xbf16>, vector<128x128xf32> -> vector<128x128xf32>
    %14 = arith.index_cast %c0_i32 : i32 to index
    %c0_9 = arith.constant 0 : index
    %c0_10 = arith.constant 0 : index
    %15 = vector.load %arg5[%14, %c0_9, %c0_10] : memref<1x1x128xf32, #tpu.memory_space<vmem>>, vector<1x1x128xf32>
    %16 = vector.shape_cast %15 : vector<1x1x128xf32> to vector<1x128xf32>
    %17 = vector.broadcast %16 : vector<1x128xf32> to vector<128x128xf32>
    %18 = arith.addf %13, %17 : vector<128x128xf32>
    %cst_11 = arith.constant 0.000000e+00 : f32
    %19 = vector.broadcast %cst_11 : f32 to vector<128x128xf32>
    %20 = arith.maximumf %18, %19 : vector<128x128xf32>
    %21 = arith.truncf %20 : vector<128x128xf32> to vector<128x128xbf16>
    %c1_i32 = arith.constant 1 : i32
    %c0_12 = arith.constant 0 : index
    %c0_13 = arith.constant 0 : index
    %22 = vector.load %arg6[%c0_12, %c0_13] : memref<128x128xbf16, #tpu.memory_space<vmem>>, vector<128x128xbf16>
    %cst_14 = arith.constant dense<0.000000e+00> : vector<128x128xf32>
    %23 = tpu.matmul %21, %22, %cst_14 {dimension_numbers = #tpu.dot_dimension_numbers<[1], [0], [0], [1], [0, 0, 1, 1], [], []>} : vector<128x128xbf16>, vector<128x128xbf16>, vector<128x128xf32> -> vector<128x128xf32>
    %c0_15 = arith.constant 0 : index
    %c0_16 = arith.constant 0 : index
    %24 = vector.load %arg7[%c0_15, %c0_16] : memref<1x128xf32, #tpu.memory_space<vmem>>, vector<1x128xf32>
    %25 = vector.broadcast %24 : vector<1x128xf32> to vector<128x128xf32>
    %26 = arith.addf %23, %25 : vector<128x128xf32>
    %27 = arith.truncf %26 : vector<128x128xf32> to vector<128x128xbf16>
    %c0_17 = arith.constant 0 : index
    %c0_18 = arith.constant 0 : index
    %28 = vector.load %arg8[%c0_17, %c0_18] : memref<128x128xbf16, #tpu.memory_space<vmem>>, vector<128x128xbf16>
    %cst_19 = arith.constant dense<0.000000e+00> : vector<128x128xf32>
    %29 = tpu.matmul %27, %28, %cst_19 {dimension_numbers = #tpu.dot_dimension_numbers<[1], [0], [0], [1], [0, 0, 1, 1], [], []>} : vector<128x128xbf16>, vector<128x128xbf16>, vector<128x128xf32> -> vector<128x128xf32>
    %c0_20 = arith.constant 0 : index
    %c0_21 = arith.constant 0 : index
    %30 = vector.load %arg9[%c0_20, %c0_21] : memref<1x128xf32, #tpu.memory_space<vmem>>, vector<1x128xf32>
    %31 = vector.broadcast %30 : vector<1x128xf32> to vector<128x128xf32>
    %32 = arith.addf %29, %31 : vector<128x128xf32>
    %c0_22 = arith.constant 0 : index
    %c0_23 = arith.constant 0 : index
    %33 = vector.load %arg10[%c0_22, %c0_23] : memref<128x128xf32, #tpu.memory_space<vmem>>, vector<128x128xf32>
    tpu.vector_store %arg10[%c0_22, %c0_23], %32 {strides = array<i32>} : memref<128x128xf32, #tpu.memory_space<vmem>>, vector<128x128xf32>,
    return
  }
  func.func @transform_0(%arg0: i32) -> (i32, i32) {
    %c0_i32 = arith.constant 0 : i32
    %c0_i32_0 = arith.constant 0 : i32
    return %arg0, %c0_i32 : i32, i32
  }
  func.func @transform_1(%arg0: i32) -> (i32, i32) {
    %c0_i32 = arith.constant 0 : i32
    %c0_i32_0 = arith.constant 0 : i32
    %c0_i32_1 = arith.constant 0 : i32
    return %c0_i32, %c0_i32_0 : i32, i32
  }
  func.func @transform_2(%arg0: i32) -> (i32, i32) {
    %c0_i32 = arith.constant 0 : i32
    %c0_i32_0 = arith.constant 0 : i32
    %c0_i32_1 = arith.constant 0 : i32
    return %c0_i32, %c0_i32_0 : i32, i32
  }
  func.func @transform_3(%arg0: i32) -> (i32, i32, i32) {
    %c0_i32 = arith.constant 0 : i32
    %c0_i32_0 = arith.constant 0 : i32
    %c0_i32_1 = arith.constant 0 : i32
    %c0_i32_2 = arith.constant 0 : i32
    return %c0_i32, %c0_i32_0, %c0_i32_1 : i32, i32, i32
  }
  func.func @transform_4(%arg0: i32) -> (i32, i32, i32) {
    %c0_i32 = arith.constant 0 : i32
    %c0_i32_0 = arith.constant 0 : i32
    %c0_i32_1 = arith.constant 0 : i32
    %c0_i32_2 = arith.constant 0 : i32
    return %c0_i32, %c0_i32_0, %c0_i32_1 : i32, i32, i32
  }
  func.func @transform_5(%arg0: i32) -> (i32, i32) {
    %c0_i32 = arith.constant 0 : i32
    %c0_i32_0 = arith.constant 0 : i32
    %c0_i32_1 = arith.constant 0 : i32
    return %c0_i32, %c0_i32_0 : i32, i32
  }
  func.func @transform_6(%arg0: i32) -> (i32, i32) {
    %c0_i32 = arith.constant 0 : i32
    %c0_i32_0 = arith.constant 0 : i32
    %c0_i32_1 = arith.constant 0 : i32
    return %c0_i32, %c0_i32_0 : i32, i32
  }
  func.func @transform_7(%arg0: i32) -> (i32, i32) {
    %c0_i32 = arith.constant 0 : i32
    %c0_i32_0 = arith.constant 0 : i32
    %c0_i32_1 = arith.constant 0 : i32
    return %c0_i32, %c0_i32_0 : i32, i32
  }
  func.func @transform_8(%arg0: i32) -> (i32, i32) {
    %c0_i32 = arith.constant 0 : i32
    %c0_i32_0 = arith.constant 0 : i32
    %c0_i32_1 = arith.constant 0 : i32
    return %c0_i32, %c0_i32_0 : i32, i32
  }
  func.func @transform_9(%arg0: i32) -> (i32, i32) {
    %c0_i32 = arith.constant 0 : i32
    %c0_i32_0 = arith.constant 0 : i32
    return %arg0, %c0_i32 : i32, i32
  }
}

module attributes {stable_mosaic.version = 11 : i64} {
  func.func @erm_forward_kernel(%arg0: i32, %arg1: memref<128x32xf32, #tpu.memory_space<vmem>>, %arg2: memref<32x128xbf16, #tpu.memory_space<vmem>>, %arg3: memref<1x128xf32, #tpu.memory_space<vmem>>, %arg4: memref<1x128x128xbf16, #tpu.memory_space<vmem>>, %arg5: memref<1x1x128xf32, #tpu.memory_space<vmem>>, %arg6: memref<128x128xbf16, #tpu.memory_space<vmem>>, %arg7: memref<1x128xf32, #tpu.memory_space<vmem>>, %arg8: memref<128x128xbf16, #tpu.memory_space<vmem>>, %arg9: memref<1x128xf32, #tpu.memory_space<vmem>>, %arg10: memref<128x128xf32, #tpu.memory_space<vmem>>) attributes {dimension_semantics = [#tpu.dimension_semantics<parallel>], iteration_bounds = array<i64: 1>, scalar_prefetch = 0 : i64, scratch_operands = 0 : i64, tpu.core_type = #tpu.core_type<tc>, window_params = [{transform_indices = @transform_0, window_bounds = array<i64: 128, 32>}, {pipeline_mode = #tpu.pipeline_mode<synchronous>, transform_indices = @transform_1, window_bounds = array<i64: 32, 128>}, {pipeline_mode = #tpu.pipeline_mode<synchronous>, transform_indices = @transform_2, window_bounds = array<i64: 1, 128>}, {pipeline_mode = #tpu.pipeline_mode<synchronous>, transform_indices = @transform_3, window_bounds = array<i64: 1, 128, 128>}, {pipeline_mode = #tpu.pipeline_mode<synchronous>, transform_indices = @transform_4, window_bounds = array<i64: 1, 1, 128>}, {pipeline_mode = #tpu.pipeline_mode<synchronous>, transform_indices = @transform_5, window_bounds = array<i64: 128, 128>}, {pipeline_mode = #tpu.pipeline_mode<synchronous>, transform_indices = @transform_6, window_bounds = array<i64: 1, 128>}, {pipeline_mode = #tpu.pipeline_mode<synchronous>, transform_indices = @transform_7, window_bounds = array<i64: 128, 128>}, {pipeline_mode = #tpu.pipeline_mode<synchronous>, transform_indices = @transform_8, window_bounds = array<i64: 1, 128>}, {transform_indices = @transform_9, window_bounds = array<i64: 128, 128>}]} {
    %c0 = arith.constant 0 : index
    %c0_0 = arith.constant 0 : index
    %0 = vector.load %arg1[%c0, %c0_0] : memref<128x32xf32, #tpu.memory_space<vmem>>, vector<128x32xf32>
    %1 = arith.truncf %0 : vector<128x32xf32> to vector<128x32xbf16>
    %c0_1 = arith.constant 0 : index
    %c0_2 = arith.constant 0 : index
    %2 = vector.load %arg2[%c0_1, %c0_2] : memref<32x128xbf16, #tpu.memory_space<vmem>>, vector<32x128xbf16>
    %cst = arith.constant dense<0.000000e+00> : vector<128x128xf32>
    %3 = tpu.matmul %1, %2, %cst {dimension_numbers = #tpu.dot_dimension_numbers<[1], [0], [0], [1], [0, 0, 1, 1], [], []>} : vector<128x32xbf16>, vector<32x128xbf16>, vector<128x128xf32> -> vector<128x128xf32>
    %c0_3 = arith.constant 0 : index
    %c0_4 = arith.constant 0 : index
    %4 = vector.load %arg3[%c0_3, %c0_4] : memref<1x128xf32, #tpu.memory_space<vmem>>, vector<1x128xf32>
    %5 = vector.broadcast %4 : vector<1x128xf32> to vector<128x128xf32>
    %6 = arith.addf %3, %5 : vector<128x128xf32>
    %cst_5 = arith.constant 0.000000e+00 : f32
    %7 = vector.broadcast %cst_5 : f32 to vector<128x128xf32>
    %8 = arith.maximumf %6, %7 : vector<128x128xf32>
    %9 = arith.truncf %8 : vector<128x128xf32> to vector<128x128xbf16>
    %c0_i32 = arith.constant 0 : i32
    %10 = arith.index_cast %c0_i32 : i32 to index
    %c0_6 = arith.constant 0 : index
    %c0_7 = arith.constant 0 : index
    %11 = vector.load %arg4[%10, %c0_6, %c0_7] : memref<1x128x128xbf16, #tpu.memory_space<vmem>>, vector<1x128x128xbf16>
    %12 = vector.shape_cast %11 : vector<1x128x128xbf16> to vector<128x128xbf16>
    %cst_8 = arith.constant dense<0.000000e+00> : vector<128x128xf32>
    %13 = tpu.matmul %9, %12, %cst_8 {dimension_numbers = #tpu.dot_dimension_numbers<[1], [0], [0], [1], [0, 0, 1, 1], [], []>} : vector<128x128xbf16>, vector<128x128xbf16>, vector<128x128xf32> -> vector<128x128xf32>
    %14 = arith.index_cast %c0_i32 : i32 to index
    %c0_9 = arith.constant 0 : index
    %c0_10 = arith.constant 0 : index
    %15 = vector.load %arg5[%14, %c0_9, %c0_10] : memref<1x1x128xf32, #tpu.memory_space<vmem>>, vector<1x1x128xf32>
    %16 = vector.shape_cast %15 : vector<1x1x128xf32> to vector<1x128xf32>
    %17 = vector.broadcast %16 : vector<1x128xf32> to vector<128x128xf32>
    %18 = arith.addf %13, %17 : vector<128x128xf32>
    %cst_11 = arith.constant 0.000000e+00 : f32
    %19 = vector.broadcast %cst_11 : f32 to vector<128x128xf32>
    %20 = arith.maximumf %18, %19 : vector<128x128xf32>
    %21 = arith.truncf %20 : vector<128x128xf32> to vector<128x128xbf16>
    %c1_i32 = arith.constant 1 : i32
    %c0_12 = arith.constant 0 : index
    %c0_13 = arith.constant 0 : index
    %22 = vector.load %arg6[%c0_12, %c0_13] : memref<128x128xbf16, #tpu.memory_space<vmem>>, vector<128x128xbf16>
    %cst_14 = arith.constant dense<0.000000e+00> : vector<128x128xf32>
    %23 = tpu.matmul %21, %22, %cst_14 {dimension_numbers = #tpu.dot_dimension_numbers<[1], [0], [0], [1], [0, 0, 1, 1], [], []>} : vector<128x128xbf16>, vector<128x128xbf16>, vector<128x128xf32> -> vector<128x128xf32>
    %c0_15 = arith.constant 0 : index
    %c0_16 = arith.constant 0 : index
    %24 = vector.load %arg7[%c0_15, %c0_16] : memref<1x128xf32, #tpu.memory_space<vmem>>, vector<1x128xf32>
    %25 = vector.broadcast %24 : vector<1x128xf32> to vector<128x128xf32>
    %26 = arith.addf %23, %25 : vector<128x128xf32>
    %27 = arith.truncf %26 : vector<128x128xf32> to vector<128x128xbf16>
    %c0_17 = arith.constant 0 : index
    %c0_18 = arith.constant 0 : index
    %28 = vector.load %arg8[%c0_17, %c0_18] : memref<128x128xbf16, #tpu.memory_space<vmem>>, vector<128x128xbf16>
    %cst_19 = arith.constant dense<0.000000e+00> : vector<128x128xf32>
    %29 = tpu.matmul %27, %28, %cst_19 {dimension_numbers = #tpu.dot_dimension_numbers<[1], [0], [0], [1], [0, 0, 1, 1], [], []>} : vector<128x128xbf16>, vector<128x128xbf16>, vector<128x128xf32> -> vector<128x128xf32>
    %c0_20 = arith.constant 0 : index
    %c0_21 = arith.constant 0 : index
    %30 = vector.load %arg9[%c0_20, %c0_21] : memref<1x128xf32, #tpu.memory_space<vmem>>, vector<1x128xf32>
    %31 = vector.broadcast %30 : vector<1x128xf32> to vector<128x128xf32>
    %32 = arith.addf %29, %31 : vector<128x128xf32>
    %c0_22 = arith.constant 0 : index
    %c0_23 = arith.constant 0 : index
    %33 = vector.load %arg10[%c0_22, %c0_23] : memref<128x128xf32, #tpu.memory_space<vmem>>, vector<128x128xf32>
    tpu.vector_store %arg10[%c0_22, %c0_23], %32 {strides = array<i32>} : memref<128x128xf32, #tpu.memory_space<vmem>>, vector<128x128xf32>,
    return
  }
  func.func @transform_0(%arg0: i32) -> (i32, i32) {
    %c0_i32 = arith.constant 0 : i32
    %c0_i32_0 = arith.constant 0 : i32
    return %arg0, %c0_i32 : i32, i32
  }
  func.func @transform_1(%arg0: i32) -> (i32, i32) {
    %c0_i32 = arith.constant 0 : i32
    %c0_i32_0 = arith.constant 0 : i32
    %c0_i32_1 = arith.constant 0 : i32
    return %c0_i32, %c0_i32_0 : i32, i32
  }
  func.func @transform_2(%arg0: i32) -> (i32, i32) {
    %c0_i32 = arith.constant 0 : i32
    %c0_i32_0 = arith.constant 0 : i32
    %c0_i32_1 = arith.constant 0 : i32
    return %c0_i32, %c0_i32_0 : i32, i32
  }
  func.func @transform_3(%arg0: i32) -> (i32, i32, i32) {
    %c0_i32 = arith.constant 0 : i32
    %c0_i32_0 = arith.constant 0 : i32
    %c0_i32_1 = arith.constant 0 : i32
    %c0_i32_2 = arith.constant 0 : i32
    return %c0_i32, %c0_i32_0, %c0_i32_1 : i32, i32, i32
  }
  func.func @transform_4(%arg0: i32) -> (i32, i32, i32) {
    %c0_i32 = arith.constant 0 : i32
    %c0_i32_0 = arith.constant 0 : i32
    %c0_i32_1 = arith.constant 0 : i32
    %c0_i32_2 = arith.constant 0 : i32
    return %c0_i32, %c0_i32_0, %c0_i32_1 : i32, i32, i32
  }
  func.func @transform_5(%arg0: i32) -> (i32, i32) {
    %c0_i32 = arith.constant 0 : i32
    %c0_i32_0 = arith.constant 0 : i32
    %c0_i32_1 = arith.constant 0 : i32
    return %c0_i32, %c0_i32_0 : i32, i32
  }
  func.func @transform_6(%arg0: i32) -> (i32, i32) {
    %c0_i32 = arith.constant 0 : i32
    %c0_i32_0 = arith.constant 0 : i32
    %c0_i32_1 = arith.constant 0 : i32
    return %c0_i32, %c0_i32_0 : i32, i32
  }
  func.func @transform_7(%arg0: i32) -> (i32, i32) {
    %c0_i32 = arith.constant 0 : i32
    %c0_i32_0 = arith.constant 0 : i32
    %c0_i32_1 = arith.constant 0 : i32
    return %c0_i32, %c0_i32_0 : i32, i32
  }
  func.func @transform_8(%arg0: i32) -> (i32, i32) {
    %c0_i32 = arith.constant 0 : i32
    %c0_i32_0 = arith.constant 0 : i32
    %c0_i32_1 = arith.constant 0 : i32
    return %c0_i32, %c0_i32_0 : i32, i32
  }
  func.func @transform_9(%arg0: i32) -> (i32, i32) {
    %c0_i32 = arith.constant 0 : i32
    %c0_i32_0 = arith.constant 0 : i32
    return %arg0, %c0_i32 : i32, i32
  }
}

</mosaic_0001>

<llo_original>
// kernel: tpu_custom_call.1
$region0: #{tpu_custom_call.1}
  #allocation0 [shape = 'u32[]', space=smem, size = 0x4, offset = 0x4, fixed_abs, tag = 'smem constant byte address 0x4 - core index']
  #allocation1 [shape = 'u32[144,128]{1,0:T(1,128)}', space=vmem, size = 0x12000, scoped, tag = 'internal scratch']
  %s0 = inlined_call_operand.hbm [shape: f32[8,32], index: 0, kind: input, shape index: {}]
  %s1 = inlined_call_operand.hbm [shape: bf16[32,128], index: 1, kind: input, shape index: {}]
  %s2 = inlined_call_operand.vmem [shape: f32[1,128], index: 2, kind: input, shape index: {}]
  %s3 = inlined_call_operand.hbm [shape: bf16[1,128,128], index: 3, kind: input, shape index: {}]
  %s4 = inlined_call_operand.vmem [shape: f32[1,1,128], index: 4, kind: input, shape index: {}]
  %s5 = inlined_call_operand.hbm [shape: bf16[128,128], index: 5, kind: input, shape index: {}]
  %s6 = inlined_call_operand.vmem [shape: f32[1,128], index: 6, kind: input, shape index: {}]
  %s7 = inlined_call_operand.hbm [shape: bf16[128,128], index: 7, kind: input, shape index: {}]
  %s8 = inlined_call_operand.vmem [shape: f32[1,128], index: 8, kind: input, shape index: {}]
  %s9 = inlined_call_operand.hbm [shape: f32[128,128], index: 9, kind: output, shape index: {}]
  %s10 = sld [smem:[#allocation0]]
  $region66: #{tpu_custom_call.1} parent=0
    _
  %s12 = ssub.s32 1, %s10
  %s13 = scalar_select 0, %s12, %s10
  $region1: #{tpu_custom_call.1} parent=0
    #allocation2 [shape = 'u8[65536]{0}', space=vmem, size = 0x10000, scoped, tag = 'input window, operand 0, single buffered']
    #allocation3 [shape = 's32[1]{0}', space=sflag, size = 0x4, scoped, tag = 'scoped memory for tpu_custom_call.1']
    #allocation4 [shape = 's32[1]{0}', space=sflag, size = 0x4, scoped, tag = 'scoped memory for tpu_custom_call.1']
    #allocation5 [shape = 'u8[8192]{0}', space=vmem, size = 0x2000, scoped, tag = 'input window, operand 1, single buffered']
    #allocation6 [shape = 's32[1]{0}', space=sflag, size = 0x4, scoped, tag = 'scoped memory for tpu_custom_call.1']
    #allocation7 [shape = 'u8[32768]{0}', space=vmem, size = 0x8000, scoped, tag = 'input window, operand 3, single buffered']
    #allocation8 [shape = 'u8[32768]{0}', space=vmem, size = 0x8000, scoped, tag = 'input window, operand 5, single buffered']
    #allocation9 [shape = 's32[1]{0}', space=sflag, size = 0x4, scoped, tag = 'scoped memory for tpu_custom_call.1']
    #allocation10 [shape = 'u8[32768]{0}', space=vmem, size = 0x8000, scoped, tag = 'input window, operand 7, single buffered']
    #allocation11 [shape = 'u8[65536]{0}', space=vmem, size = 0x10000, scoped, tag = 'output window, operand 0, single buffered']
    %14 = vsyncpa [#allocation3], 0
    %15 = vsyncpa [#allocation6], 0
    %16 = vsyncpa [#allocation9], 0
    %17 = vsyncpa [#allocation4], 0
    // Predicated region
    $region2: #{tpu_custom_call.1} parent=1 // pred_check
      _
    $region3: #{tpu_custom_call.1} parent=1 // pred_check_branch
      %19 = sbr.rel (0) target = $region5
    $region4: #{tpu_custom_call.1} parent=1 // pred_region
      %s21 = ssub.s32 2048, 128
      %22 = vsyncadd [#allocation3], %s21
      %s23 = sshll.u32 [#allocation2], 4
      %s24 = int_to_ptr.vmem [resolvable:$true] %s23
      %29 = dma.hbm_to_vmem [thread:$0]  %s0, 128, %s24, [#allocation3], 128, 128, 8
    $region5: #{tpu_custom_call.1} parent=1 // pred_fallthru
      _
    // Predicated region
    $region6: #{tpu_custom_call.1} parent=1 // pred_check
      _
    $region7: #{tpu_custom_call.1} parent=1 // pred_check_branch
      %31 = sbr.rel (0) target = $region9
    $region8: #{tpu_custom_call.1} parent=1 // pred_region
      %s33 = ssub.s32 256, 256
      %34 = vsyncadd [#allocation6], %s33
      %s35 = sshll.u32 [#allocation5], 4
      %s36 = int_to_ptr.vmem [resolvable:$true] %s35
      %41 = dma.hbm_to_vmem [thread:$0]  %s1, 256, %s36, [#allocation6], 64, 64, 4
    $region9: #{tpu_custom_call.1} parent=1 // pred_fallthru
      _
    // Predicated region
    $region10: #{tpu_custom_call.1} parent=1 // pred_check
      _
    $region11: #{tpu_custom_call.1} parent=1 // pred_check_branch
      %43 = sbr.rel (0) target = $region13
    $region12: #{tpu_custom_call.1} parent=1 // pred_region
      _
    $region13: #{tpu_custom_call.1} parent=1 // pred_fallthru
      _
    // Predicated region
    $region14: #{tpu_custom_call.1} parent=1 // pred_check
      _
    $region15: #{tpu_custom_call.1} parent=1 // pred_check_branch
      %45 = sbr.rel (0) target = $region17
    $region16: #{tpu_custom_call.1} parent=1 // pred_region
      %s47 = ssub.s32 1024, 1024
      %48 = vsyncadd [#allocation6], %s47
      %s49 = sshll.u32 [#allocation7], 4
      %s50 = int_to_ptr.vmem [resolvable:$true] %s49
      %55 = dma.hbm_to_vmem [thread:$0]  %s3, 1024, %s50, [#allocation6], 64, 64, 4
    $region17: #{tpu_custom_call.1} parent=1 // pred_fallthru
      _
    // Predicated region
    $region18: #{tpu_custom_call.1} parent=1 // pred_check
      _
    $region19: #{tpu_custom_call.1} parent=1 // pred_check_branch
      %57 = sbr.rel (0) target = $region21
    $region20: #{tpu_custom_call.1} parent=1 // pred_region
      _
    $region21: #{tpu_custom_call.1} parent=1 // pred_fallthru
      _
    // Predicated region
    $region22: #{tpu_custom_call.1} parent=1 // pred_check
      _
    $region23: #{tpu_custom_call.1} parent=1 // pred_check_branch
      %59 = sbr.rel (0) target = $region25
    $region24: #{tpu_custom_call.1} parent=1 // pred_region
      %s61 = ssub.s32 1024, 1024
      %62 = vsyncadd [#allocation9], %s61
      %s63 = sshll.u32 [#allocation8], 4
      %s64 = int_to_ptr.vmem [resolvable:$true] %s63
      %69 = dma.hbm_to_vmem [thread:$0]  %s5, 1024, %s64, [#allocation9], 64, 64, 4
    $region25: #{tpu_custom_call.1} parent=1 // pred_fallthru
      _
    // Predicated region
    $region26: #{tpu_custom_call.1} parent=1 // pred_check
      _
    $region27: #{tpu_custom_call.1} parent=1 // pred_check_branch
      %71 = sbr.rel (0) target = $region29
    $region28: #{tpu_custom_call.1} parent=1 // pred_region
      _
    $region29: #{tpu_custom_call.1} parent=1 // pred_fallthru
      _
    // Predicated region
    $region30: #{tpu_custom_call.1} parent=1 // pred_check
      _
    $region31: #{tpu_custom_call.1} parent=1 // pred_check_branch
      %73 = sbr.rel (0) target = $region33
    $region32: #{tpu_custom_call.1} parent=1 // pred_region
      %s75 = ssub.s32 1024, 1024
      %76 = vsyncadd [#allocation9], %s75
      %s77 = sshll.u32 [#allocation10], 4
      %s78 = int_to_ptr.vmem [resolvable:$true] %s77
      %83 = dma.hbm_to_vmem [thread:$0]  %s7, 1024, %s78, [#allocation9], 64, 64, 4
    $region33: #{tpu_custom_call.1} parent=1 // pred_fallthru
      _
    // Predicated region
    $region34: #{tpu_custom_call.1} parent=1 // pred_check
      _
    $region35: #{tpu_custom_call.1} parent=1 // pred_check_branch
      %85 = sbr.rel (0) target = $region37
    $region36: #{tpu_custom_call.1} parent=1 // pred_region
      _
    $region37: #{tpu_custom_call.1} parent=1 // pred_fallthru
      _
    // Predicated region
    $region38: #{tpu_custom_call.1} parent=1 // pred_check
      _
    $region39: #{tpu_custom_call.1} parent=1 // pred_check_branch
      %87 = sbr.rel (0) target = $region41
    $region40: #{tpu_custom_call.1} parent=1 // pred_region
      %88 = dma.done [#allocation3], 2048
    $region41: #{tpu_custom_call.1} parent=1 // pred_fallthru
      _
    // Predicated region
    $region42: #{tpu_custom_call.1} parent=1 // pred_check
      _
    $region43: #{tpu_custom_call.1} parent=1 // pred_check_branch
      %90 = sbr.rel (0) target = $region45
    $region44: #{tpu_custom_call.1} parent=1 // pred_region
      %91 = dma.done [#allocation6], 256
    $region45: #{tpu_custom_call.1} parent=1 // pred_fallthru
      _
    // Predicated region
    $region46: #{tpu_custom_call.1} parent=1 // pred_check
      _
    $region47: #{tpu_custom_call.1} parent=1 // pred_check_branch
      %93 = sbr.rel (0) target = $region49
    $region48: #{tpu_custom_call.1} parent=1 // pred_region
      %94 = dma.done [#allocation6], 1024
    $region49: #{tpu_custom_call.1} parent=1 // pred_fallthru
      _
    // Predicated region
    $region50: #{tpu_custom_call.1} parent=1 // pred_check
      _
    $region51: #{tpu_custom_call.1} parent=1 // pred_check_branch
      %96 = sbr.rel (0) target = $region53
    $region52: #{tpu_custom_call.1} parent=1 // pred_region
      %97 = dma.done [#allocation9], 1024
    $region53: #{tpu_custom_call.1} parent=1 // pred_fallthru
      _
    // Predicated region
    $region54: #{tpu_custom_call.1} parent=1 // pred_check
      _
    $region55: #{tpu_custom_call.1} parent=1 // pred_check_branch
      %99 = sbr.rel (0) target = $region57
    $region56: #{tpu_custom_call.1} parent=1 // pred_region
      %100 = dma.done [#allocation9], 1024
    $region57: #{tpu_custom_call.1} parent=1 // pred_fallthru
      _
    %v102 = vld [vmem:[#allocation2] sm:$0xff]
    %v103 = vld [vmem:[#allocation2 + $0x8] sm:$0xff]
    %v104 = vld [vmem:[#allocation2 + $0x10] sm:$0xff]
    %v105 = vld [vmem:[#allocation2 + $0x18] sm:$0xff]
    %v106 = vld [vmem:[#allocation2 + $0x20] sm:$0xff]
    %v107 = vld [vmem:[#allocation2 + $0x28] sm:$0xff]
    %v108 = vld [vmem:[#allocation2 + $0x30] sm:$0xff]
    %v109 = vld [vmem:[#allocation2 + $0x38] sm:$0xff]
    %v110 = vld [vmem:[#allocation2 + $0x40] sm:$0xff]
    %v111 = vld [vmem:[#allocation2 + $0x48] sm:$0xff]
    %v112 = vld [vmem:[#allocation2 + $0x50] sm:$0xff]
    %v113 = vld [vmem:[#allocation2 + $0x58] sm:$0xff]
    %v114 = vld [vmem:[#allocation2 + $0x60] sm:$0xff]
    %v115 = vld [vmem:[#allocation2 + $0x68] sm:$0xff]
    %v116 = vld [vmem:[#allocation2 + $0x70] sm:$0xff]
    %v117 = vld [vmem:[#allocation2 + $0x78] sm:$0xff]
    %v118 = vpack.c.bf16 %v103, %v102
    %v119 = vpack.c.bf16 %v105, %v104
    %v120 = vpack.c.bf16 %v107, %v106
    %v121 = vpack.c.bf16 %v109, %v108
    %v122 = vpack.c.bf16 %v111, %v110
    %v123 = vpack.c.bf16 %v113, %v112
    %v124 = vpack.c.bf16 %v115, %v114
    %v125 = vpack.c.bf16 %v117, %v116
    %v126 = vld [vmem:[#allocation5] sm:$0xf]
    %v127 = vld [vmem:[#allocation5 + $0x4] sm:$0xf]
    %v128 = vld [vmem:[#allocation5 + $0x8] sm:$0xf]
    %v129 = vld [vmem:[#allocation5 + $0xc] sm:$0xf]
    %v130 = vld [vmem:[%s2] sm:$0x1]
    %v132 = vlaneseq
    %v133 = vshrl.u32 %v132, 7
    %v134 = vsub.s32 0, %v133
    %v135 = vrot.slane %v130, %v134
    %v141 = vunpack.c.l.b16 %v126
    %v142 = vunpack.c.l.b16 %v127
    %v143 = vunpack.c.l.b16 %v128
    %v144 = vunpack.c.l.b16 %v129
    %v145 = vpack.c.b16 %v142, %v141
    %v146 = vpack.c.b16 %v144, %v143
    %vm149 = vcmask 261120
    %v151 = vsel %vm149, %v118, 0
    %v154 = vsel %vm149, %v119, 0
    %v157 = vsel %vm149, %v120, 0
    %v160 = vsel %vm149, %v121, 0
    %v163 = vsel %vm149, %v122, 0
    %v166 = vsel %vm149, %v123, 0
    %v169 = vsel %vm149, %v124, 0
    %v172 = vsel %vm149, %v125, 0
    %174 = vmatprep.subr.bf16.mxu0 0
    %175 = vmatpush1.bf16.msra.mxu0 0
    %176 = vmatprep.subr.bf16.mxu0 0
    %177 = vmatpush1.bf16.msra.mxu0 0
    %178 = vmatprep.subr.bf16.mxu0 0
    %179 = vmatpush1.bf16.msra.mxu0 0
    %180 = vmatprep.subr.bf16.mxu0 0
    %181 = vmatpush1.bf16.msra.mxu0 0
    %182 = vmatprep.subr.bf16.mxu0 0
    %183 = vmatpush1.bf16.msra.mxu0 0
    %184 = vmatprep.subr.bf16.mxu0 0
    %185 = vmatpush1.bf16.msra.mxu0 0
    %186 = vmatprep.subr.bf16.mxu0 0
    %187 = vmatpush1.bf16.msra.mxu0 %v146
    %188 = vmatprep.subr.bf16.mxu0 0
    %189 = vmatpush1.bf16.msra.mxu0 %v145
    %190 = vmatprep.subr.bf16.mxu0 0
    %191 = vmatpush2.bf16.msra.mxu0 0
    %192 = vmatprep.subr.bf16.mxu0 0
    %193 = vmatpush2.bf16.msra.mxu0 0
    %194 = vmatprep.subr.bf16.mxu0 0
    %195 = vmatpush2.bf16.msra.mxu0 0
    %196 = vmatprep.subr.bf16.mxu0 0
    %197 = vmatpush2.bf16.msra.mxu0 0
    %198 = vmatprep.subr.bf16.mxu0 0
    %199 = vmatpush2.bf16.msra.mxu0 0
    %200 = vmatprep.subr.bf16.mxu0 0
    %201 = vmatpush2.bf16.msra.mxu0 0
    %202 = vmatprep.subr.bf16.mxu0 0
    %203 = vmatpush2.bf16.msra.mxu0 0
    %204 = vmatprep.subr.bf16.mxu0 0
    %205 = vmatpush2.bf16.msra.mxu0 0
    %206 = vmatprep.mubr.bf16.mxu0 0
    %207 = vmatmul.mubr.bf16.gmra.mxu0 %v151
    %v208 = vpop.f32.mrf.mxu0
    %v209 = vadd.f32 %v135, %v208
    %v210 = vpop.f32.mrf.mxu0
    %v211 = vpop.f32.mrf.mxu0
    %v212 = vadd.f32 %v135, %v211
    %v213 = vpop.f32.mrf.mxu0
    %214 = vmatprep.mubr.bf16.mxu0 0
    %215 = vmatmul.mubr.bf16.gmra.mxu0 %v154
    %v216 = vpop.f32.mrf.mxu0
    %v217 = vadd.f32 %v135, %v216
    %v218 = vpop.f32.mrf.mxu0
    %v219 = vpop.f32.mrf.mxu0
    %v220 = vadd.f32 %v135, %v219
    %v221 = vpop.f32.mrf.mxu0
    %222 = vmatprep.mubr.bf16.mxu0 0
    %223 = vmatmul.mubr.bf16.gmra.mxu0 %v157
    %v224 = vpop.f32.mrf.mxu0
    %v225 = vadd.f32 %v135, %v224
    %v226 = vpop.f32.mrf.mxu0
    %v227 = vpop.f32.mrf.mxu0
    %v228 = vadd.f32 %v135, %v227
    %v229 = vpop.f32.mrf.mxu0
    %230 = vmatprep.mubr.bf16.mxu0 0
    %231 = vmatmul.mubr.bf16.gmra.mxu0 %v160
    %v232 = vpop.f32.mrf.mxu0
    %v233 = vadd.f32 %v135, %v232
    %v234 = vpop.f32.mrf.mxu0
    %v235 = vpop.f32.mrf.mxu0
    %v236 = vadd.f32 %v135, %v235
    %v237 = vpop.f32.mrf.mxu0
    %238 = vmatprep.mubr.bf16.mxu0 0
    %239 = vmatmul.mubr.bf16.gmra.mxu0 %v163
    %v240 = vpop.f32.mrf.mxu0
    %v241 = vadd.f32 %v135, %v240
    %v242 = vpop.f32.mrf.mxu0
    %v243 = vpop.f32.mrf.mxu0
    %v244 = vadd.f32 %v135, %v243
    %v245 = vpop.f32.mrf.mxu0
    %246 = vmatprep.mubr.bf16.mxu0 0
    %247 = vmatmul.mubr.bf16.gmra.mxu0 %v166
    %v248 = vpop.f32.mrf.mxu0
    %v249 = vadd.f32 %v135, %v248
    %v250 = vpop.f32.mrf.mxu0
    %v251 = vpop.f32.mrf.mxu0
    %v252 = vadd.f32 %v135, %v251
    %v253 = vpop.f32.mrf.mxu0
    %254 = vmatprep.mubr.bf16.mxu0 0
    %255 = vmatmul.mubr.bf16.gmra.mxu0 %v169
    %v256 = vpop.f32.mrf.mxu0
    %v257 = vadd.f32 %v135, %v256
    %v258 = vpop.f32.mrf.mxu0
    %v259 = vpop.f32.mrf.mxu0
    %v260 = vadd.f32 %v135, %v259
    %v261 = vpop.f32.mrf.mxu0
    %262 = vmatprep.mubr.bf16.mxu0 0
    %263 = vmatmul.mubr.bf16.gmra.mxu0 %v172
    %v264 = vpop.f32.mrf.mxu0
    %v265 = vadd.f32 %v135, %v264
    %v266 = vpop.f32.mrf.mxu0
    %v267 = vpop.f32.mrf.mxu0
    %v268 = vadd.f32 %v135, %v267
    %v269 = vpop.f32.mrf.mxu0
    %270 = vdwg.mxu0
    %v271 = vmax.f32 %v209, 0.0
    %v272 = vmax.f32 %v212, 0.0
    %v273 = vmax.f32 %v217, 0.0
    %v274 = vmax.f32 %v220, 0.0
    %v275 = vmax.f32 %v225, 0.0
    %v276 = vmax.f32 %v228, 0.0
    %v277 = vmax.f32 %v233, 0.0
    %v278 = vmax.f32 %v236, 0.0
    %v279 = vmax.f32 %v241, 0.0
    %v280 = vmax.f32 %v244, 0.0
    %v281 = vmax.f32 %v249, 0.0
    %v282 = vmax.f32 %v252, 0.0
    %v283 = vmax.f32 %v257, 0.0
    %v284 = vmax.f32 %v260, 0.0
    %v285 = vmax.f32 %v265, 0.0
    %v286 = vmax.f32 %v268, 0.0
    %v287 = vpack.c.bf16 %v272, %v271
    %v288 = vpack.c.bf16 %v274, %v273
    %v289 = vpack.c.bf16 %v276, %v275
    %v290 = vpack.c.bf16 %v278, %v277
    %v291 = vpack.c.bf16 %v280, %v279
    %v292 = vpack.c.bf16 %v282, %v281
    %v293 = vpack.c.bf16 %v284, %v283
    %v294 = vpack.c.bf16 %v286, %v285
    %v295 = vld [vmem:[#allocation7] sm:$0xf]
    %v296 = vld [vmem:[#allocation7 + $0x4] sm:$0xf]
    %v297 = vld [vmem:[#allocation7 + $0x8] sm:$0xf]
    %v298 = vld [vmem:[#allocation7 + $0xc] sm:$0xf]
    %v299 = vld [vmem:[#allocation7 + $0x10] sm:$0xf]
    %v300 = vld [vmem:[#allocation7 + $0x14] sm:$0xf]
    %v301 = vld [vmem:[#allocation7 + $0x18] sm:$0xf]
    %v302 = vld [vmem:[#allocation7 + $0x1c] sm:$0xf]
    %v303 = vld [vmem:[#allocation7 + $0x20] sm:$0xf]
    %v304 = vld [vmem:[#allocation7 + $0x24] sm:$0xf]
    %v305 = vld [vmem:[#allocation7 + $0x28] sm:$0xf]
    %v306 = vld [vmem:[#allocation7 + $0x2c] sm:$0xf]
    %v307 = vld [vmem:[#allocation7 + $0x30] sm:$0xf]
    %v308 = vld [vmem:[#allocation7 + $0x34] sm:$0xf]
    %v309 = vld [vmem:[#allocation7 + $0x38] sm:$0xf]
    %v310 = vld [vmem:[#allocation7 + $0x3c] sm:$0xf]
    %v311 = vld [vmem:[%s4] sm:$0x1]
    %v313 = vlaneseq
    %v314 = vshrl.u32 %v313, 7
    %v315 = vsub.s32 0, %v314
    %v316 = vrot.slane %v311, %v315
    %v334 = vunpack.c.l.b16 %v295
    %v335 = vunpack.c.l.b16 %v296
    %v336 = vunpack.c.l.b16 %v297
    %v337 = vunpack.c.l.b16 %v298
    %v338 = vunpack.c.l.b16 %v299
    %v339 = vunpack.c.l.b16 %v300
    %v340 = vunpack.c.l.b16 %v301
    %v341 = vunpack.c.l.b16 %v302
    %v342 = vunpack.c.l.b16 %v303
    %v343 = vunpack.c.l.b16 %v304
    %v344 = vunpack.c.l.b16 %v305
    %v345 = vunpack.c.l.b16 %v306
    %v346 = vunpack.c.l.b16 %v307
    %v347 = vunpack.c.l.b16 %v308
    %v348 = vunpack.c.l.b16 %v309
    %v349 = vunpack.c.l.b16 %v310
    %v350 = vpack.c.b16 %v335, %v334
    %v351 = vpack.c.b16 %v337, %v336
    %v352 = vpack.c.b16 %v339, %v338
    %v353 = vpack.c.b16 %v341, %v340
    %v354 = vpack.c.b16 %v343, %v342
    %v355 = vpack.c.b16 %v345, %v344
    %v356 = vpack.c.b16 %v347, %v346
    %v357 = vpack.c.b16 %v349, %v348
    %366 = vmatprep.subr.bf16.mxu0 0
    %367 = vmatpush1.bf16.msra.mxu0 %v357
    %368 = vmatprep.subr.bf16.mxu0 0
    %369 = vmatpush1.bf16.msra.mxu0 %v356
    %370 = vmatprep.subr.bf16.mxu0 0
    %371 = vmatpush1.bf16.msra.mxu0 %v355
    %372 = vmatprep.subr.bf16.mxu0 0
    %373 = vmatpush1.bf16.msra.mxu0 %v354
    %374 = vmatprep.subr.bf16.mxu0 0
    %375 = vmatpush1.bf16.msra.mxu0 %v353
    %376 = vmatprep.subr.bf16.mxu0 0
    %377 = vmatpush1.bf16.msra.mxu0 %v352
    %378 = vmatprep.subr.bf16.mxu0 0
    %379 = vmatpush1.bf16.msra.mxu0 %v351
    %380 = vmatprep.subr.bf16.mxu0 0
    %381 = vmatpush1.bf16.msra.mxu0 %v350
    %382 = vmatprep.subr.bf16.mxu0 0
    %383 = vmatpush2.bf16.msra.mxu0 0
    %384 = vmatprep.subr.bf16.mxu0 0
    %385 = vmatpush2.bf16.msra.mxu0 0
    %386 = vmatprep.subr.bf16.mxu0 0
    %387 = vmatpush2.bf16.msra.mxu0 0
    %388 = vmatprep.subr.bf16.mxu0 0
    %389 = vmatpush2.bf16.msra.mxu0 0
    %390 = vmatprep.subr.bf16.mxu0 0
    %391 = vmatpush2.bf16.msra.mxu0 0
    %392 = vmatprep.subr.bf16.mxu0 0
    %393 = vmatpush2.bf16.msra.mxu0 0
    %394 = vmatprep.subr.bf16.mxu0 0
    %395 = vmatpush2.bf16.msra.mxu0 0
    %396 = vmatprep.subr.bf16.mxu0 0
    %397 = vmatpush2.bf16.msra.mxu0 0
    %398 = vmatprep.mubr.bf16.mxu0 0
    %399 = vmatmul.mubr.bf16.gmra.mxu0 %v287
    %v400 = vpop.f32.mrf.mxu0
    %v401 = vadd.f32 %v316, %v400
    %v402 = vpop.f32.mrf.mxu0
    %v403 = vpop.f32.mrf.mxu0
    %v404 = vadd.f32 %v316, %v403
    %v405 = vpop.f32.mrf.mxu0
    %406 = vmatprep.mubr.bf16.mxu0 0
    %407 = vmatmul.mubr.bf16.gmra.mxu0 %v288
    %v408 = vpop.f32.mrf.mxu0
    %v409 = vadd.f32 %v316, %v408
    %v410 = vpop.f32.mrf.mxu0
    %v411 = vpop.f32.mrf.mxu0
    %v412 = vadd.f32 %v316, %v411
    %v413 = vpop.f32.mrf.mxu0
    %414 = vmatprep.mubr.bf16.mxu0 0
    %415 = vmatmul.mubr.bf16.gmra.mxu0 %v289
    %v416 = vpop.f32.mrf.mxu0
    %v417 = vadd.f32 %v316, %v416
    %v418 = vpop.f32.mrf.mxu0
    %v419 = vpop.f32.mrf.mxu0
    %v420 = vadd.f32 %v316, %v419
    %v421 = vpop.f32.mrf.mxu0
    %422 = vmatprep.mubr.bf16.mxu0 0
    %423 = vmatmul.mubr.bf16.gmra.mxu0 %v290
    %v424 = vpop.f32.mrf.mxu0
    %v425 = vadd.f32 %v316, %v424
    %v426 = vpop.f32.mrf.mxu0
    %v427 = vpop.f32.mrf.mxu0
    %v428 = vadd.f32 %v316, %v427
    %v429 = vpop.f32.mrf.mxu0
    %430 = vmatprep.mubr.bf16.mxu0 0
    %431 = vmatmul.mubr.bf16.gmra.mxu0 %v291
    %v432 = vpop.f32.mrf.mxu0
    %v433 = vadd.f32 %v316, %v432
    %v434 = vpop.f32.mrf.mxu0
    %v435 = vpop.f32.mrf.mxu0
    %v436 = vadd.f32 %v316, %v435
    %v437 = vpop.f32.mrf.mxu0
    %438 = vmatprep.mubr.bf16.mxu0 0
    %439 = vmatmul.mubr.bf16.gmra.mxu0 %v292
    %v440 = vpop.f32.mrf.mxu0
    %v441 = vadd.f32 %v316, %v440
    %v442 = vpop.f32.mrf.mxu0
    %v443 = vpop.f32.mrf.mxu0
    %v444 = vadd.f32 %v316, %v443
    %v445 = vpop.f32.mrf.mxu0
    %446 = vmatprep.mubr.bf16.mxu0 0
    %447 = vmatmul.mubr.bf16.gmra.mxu0 %v293
    %v448 = vpop.f32.mrf.mxu0
    %v449 = vadd.f32 %v316, %v448
    %v450 = vpop.f32.mrf.mxu0
    %v451 = vpop.f32.mrf.mxu0
    %v452 = vadd.f32 %v316, %v451
    %v453 = vpop.f32.mrf.mxu0
    %454 = vmatprep.mubr.bf16.mxu0 0
    %455 = vmatmul.mubr.bf16.gmra.mxu0 %v294
    %v456 = vpop.f32.mrf.mxu0
    %v457 = vadd.f32 %v316, %v456
    %v458 = vpop.f32.mrf.mxu0
    %v459 = vpop.f32.mrf.mxu0
    %v460 = vadd.f32 %v316, %v459
    %v461 = vpop.f32.mrf.mxu0
    %462 = vdwg.mxu0
    %v463 = vmax.f32 %v401, 0.0
    %v464 = vmax.f32 %v404, 0.0
    %v465 = vmax.f32 %v409, 0.0
    %v466 = vmax.f32 %v412, 0.0
    %v467 = vmax.f32 %v417, 0.0
    %v468 = vmax.f32 %v420, 0.0
    %v469 = vmax.f32 %v425, 0.0
    %v470 = vmax.f32 %v428, 0.0
    %v471 = vmax.f32 %v433, 0.0
    %v472 = vmax.f32 %v436, 0.0
    %v473 = vmax.f32 %v441, 0.0
    %v474 = vmax.f32 %v444, 0.0
    %v475 = vmax.f32 %v449, 0.0
    %v476 = vmax.f32 %v452, 0.0
    %v477 = vmax.f32 %v457, 0.0
    %v478 = vmax.f32 %v460, 0.0
    %v479 = vpack.c.bf16 %v464, %v463
    %v480 = vpack.c.bf16 %v466, %v465
    %v481 = vpack.c.bf16 %v468, %v467
    %v482 = vpack.c.bf16 %v470, %v469
    %v483 = vpack.c.bf16 %v472, %v471
    %v484 = vpack.c.bf16 %v474, %v473
    %v485 = vpack.c.bf16 %v476, %v475
    %v486 = vpack.c.bf16 %v478, %v477
    %v487 = vld [vmem:[#allocation8] sm:$0xf]
    %v488 = vld [vmem:[#allocation8 + $0x4] sm:$0xf]
    %v489 = vld [vmem:[#allocation8 + $0x8] sm:$0xf]
    %v490 = vld [vmem:[#allocation8 + $0xc] sm:$0xf]
    %v491 = vld [vmem:[#allocation8 + $0x10] sm:$0xf]
    %v492 = vld [vmem:[#allocation8 + $0x14] sm:$0xf]
    %v493 = vld [vmem:[#allocation8 + $0x18] sm:$0xf]
    %v494 = vld [vmem:[#allocation8 + $0x1c] sm:$0xf]
    %v495 = vld [vmem:[#allocation8 + $0x20] sm:$0xf]
    %v496 = vld [vmem:[#allocation8 + $0x24] sm:$0xf]
    %v497 = vld [vmem:[#allocation8 + $0x28] sm:$0xf]
    %v498 = vld [vmem:[#allocation8 + $0x2c] sm:$0xf]
    %v499 = vld [vmem:[#allocation8 + $0x30] sm:$0xf]
    %v500 = vld [vmem:[#allocation8 + $0x34] sm:$0xf]
    %v501 = vld [vmem:[#allocation8 + $0x38] sm:$0xf]
    %v502 = vld [vmem:[#allocation8 + $0x3c] sm:$0xf]
    %v503 = vld [vmem:[%s6] sm:$0x1]
    %v505 = vlaneseq
    %v506 = vshrl.u32 %v505, 7
    %v507 = vsub.s32 0, %v506
    %v508 = vrot.slane %v503, %v507
    %v526 = vunpack.c.l.b16 %v487
    %v527 = vunpack.c.l.b16 %v488
    %v528 = vunpack.c.l.b16 %v489
    %v529 = vunpack.c.l.b16 %v490
    %v530 = vunpack.c.l.b16 %v491
    %v531 = vunpack.c.l.b16 %v492
    %v532 = vunpack.c.l.b16 %v493
    %v533 = vunpack.c.l.b16 %v494
    %v534 = vunpack.c.l.b16 %v495
    %v535 = vunpack.c.l.b16 %v496
    %v536 = vunpack.c.l.b16 %v497
    %v537 = vunpack.c.l.b16 %v498
    %v538 = vunpack.c.l.b16 %v499
    %v539 = vunpack.c.l.b16 %v500
    %v540 = vunpack.c.l.b16 %v501
    %v541 = vunpack.c.l.b16 %v502
    %v542 = vpack.c.b16 %v527, %v526
    %v543 = vpack.c.b16 %v529, %v528
    %v544 = vpack.c.b16 %v531, %v530
    %v545 = vpack.c.b16 %v533, %v532
    %v546 = vpack.c.b16 %v535, %v534
    %v547 = vpack.c.b16 %v537, %v536
    %v548 = vpack.c.b16 %v539, %v538
    %v549 = vpack.c.b16 %v541, %v540
    %558 = vmatprep.subr.bf16.mxu0 0
    %559 = vmatpush1.bf16.msra.mxu0 %v549
    %560 = vmatprep.subr.bf16.mxu0 0
    %561 = vmatpush1.bf16.msra.mxu0 %v548
    %562 = vmatprep.subr.bf16.mxu0 0
    %563 = vmatpush1.bf16.msra.mxu0 %v547
    %564 = vmatprep.subr.bf16.mxu0 0
    %565 = vmatpush1.bf16.msra.mxu0 %v546
    %566 = vmatprep.subr.bf16.mxu0 0
    %567 = vmatpush1.bf16.msra.mxu0 %v545
    %568 = vmatprep.subr.bf16.mxu0 0
    %569 = vmatpush1.bf16.msra.mxu0 %v544
    %570 = vmatprep.subr.bf16.mxu0 0
    %571 = vmatpush1.bf16.msra.mxu0 %v543
    %572 = vmatprep.subr.bf16.mxu0 0
    %573 = vmatpush1.bf16.msra.mxu0 %v542
    %574 = vmatprep.subr.bf16.mxu0 0
    %575 = vmatpush2.bf16.msra.mxu0 0
    %576 = vmatprep.subr.bf16.mxu0 0
    %577 = vmatpush2.bf16.msra.mxu0 0
    %578 = vmatprep.subr.bf16.mxu0 0
    %579 = vmatpush2.bf16.msra.mxu0 0
    %580 = vmatprep.subr.bf16.mxu0 0
    %581 = vmatpush2.bf16.msra.mxu0 0
    %582 = vmatprep.subr.bf16.mxu0 0
    %583 = vmatpush2.bf16.msra.mxu0 0
    %584 = vmatprep.subr.bf16.mxu0 0
    %585 = vmatpush2.bf16.msra.mxu0 0
    %586 = vmatprep.subr.bf16.mxu0 0
    %587 = vmatpush2.bf16.msra.mxu0 0
    %588 = vmatprep.subr.bf16.mxu0 0
    %589 = vmatpush2.bf16.msra.mxu0 0
    %590 = vmatprep.mubr.bf16.mxu0 0
    %591 = vmatmul.mubr.bf16.gmra.mxu0 %v479
    %v592 = vpop.f32.mrf.mxu0
    %v593 = vadd.f32 %v508, %v592
    %v594 = vpop.f32.mrf.mxu0
    %v595 = vpop.f32.mrf.mxu0
    %v596 = vadd.f32 %v508, %v595
    %v597 = vpop.f32.mrf.mxu0
    %598 = vmatprep.mubr.bf16.mxu0 0
    %599 = vmatmul.mubr.bf16.gmra.mxu0 %v480
    %v600 = vpop.f32.mrf.mxu0
    %v601 = vadd.f32 %v508, %v600
    %v602 = vpop.f32.mrf.mxu0
    %v603 = vpop.f32.mrf.mxu0
    %v604 = vadd.f32 %v508, %v603
    %v605 = vpop.f32.mrf.mxu0
    %606 = vmatprep.mubr.bf16.mxu0 0
    %607 = vmatmul.mubr.bf16.gmra.mxu0 %v481
    %v608 = vpop.f32.mrf.mxu0
    %v609 = vadd.f32 %v508, %v608
    %v610 = vpop.f32.mrf.mxu0
    %v611 = vpop.f32.mrf.mxu0
    %v612 = vadd.f32 %v508, %v611
    %v613 = vpop.f32.mrf.mxu0
    %614 = vmatprep.mubr.bf16.mxu0 0
    %615 = vmatmul.mubr.bf16.gmra.mxu0 %v482
    %v616 = vpop.f32.mrf.mxu0
    %v617 = vadd.f32 %v508, %v616
    %v618 = vpop.f32.mrf.mxu0
    %v619 = vpop.f32.mrf.mxu0
    %v620 = vadd.f32 %v508, %v619
    %v621 = vpop.f32.mrf.mxu0
    %622 = vmatprep.mubr.bf16.mxu0 0
    %623 = vmatmul.mubr.bf16.gmra.mxu0 %v483
    %v624 = vpop.f32.mrf.mxu0
    %v625 = vadd.f32 %v508, %v624
    %v626 = vpop.f32.mrf.mxu0
    %v627 = vpop.f32.mrf.mxu0
    %v628 = vadd.f32 %v508, %v627
    %v629 = vpop.f32.mrf.mxu0
    %630 = vmatprep.mubr.bf16.mxu0 0
    %631 = vmatmul.mubr.bf16.gmra.mxu0 %v484
    %v632 = vpop.f32.mrf.mxu0
    %v633 = vadd.f32 %v508, %v632
    %v634 = vpop.f32.mrf.mxu0
    %v635 = vpop.f32.mrf.mxu0
    %v636 = vadd.f32 %v508, %v635
    %v637 = vpop.f32.mrf.mxu0
    %638 = vmatprep.mubr.bf16.mxu0 0
    %639 = vmatmul.mubr.bf16.gmra.mxu0 %v485
    %v640 = vpop.f32.mrf.mxu0
    %v641 = vadd.f32 %v508, %v640
    %v642 = vpop.f32.mrf.mxu0
    %v643 = vpop.f32.mrf.mxu0
    %v644 = vadd.f32 %v508, %v643
    %v645 = vpop.f32.mrf.mxu0
    %646 = vmatprep.mubr.bf16.mxu0 0
    %647 = vmatmul.mubr.bf16.gmra.mxu0 %v486
    %v648 = vpop.f32.mrf.mxu0
    %v649 = vadd.f32 %v508, %v648
    %v650 = vpop.f32.mrf.mxu0
    %v651 = vpop.f32.mrf.mxu0
    %v652 = vadd.f32 %v508, %v651
    %v653 = vpop.f32.mrf.mxu0
    %654 = vdwg.mxu0
    %v655 = vpack.c.bf16 %v596, %v593
    %v656 = vpack.c.bf16 %v604, %v601
    %v657 = vpack.c.bf16 %v612, %v609
    %v658 = vpack.c.bf16 %v620, %v617
    %v659 = vpack.c.bf16 %v628, %v625
    %v660 = vpack.c.bf16 %v636, %v633
    %v661 = vpack.c.bf16 %v644, %v641
    %v662 = vpack.c.bf16 %v652, %v649
    %v663 = vld [vmem:[#allocation10] sm:$0xf]
    %v664 = vld [vmem:[#allocation10 + $0x4] sm:$0xf]
    %v665 = vld [vmem:[#allocation10 + $0x8] sm:$0xf]
    %v666 = vld [vmem:[#allocation10 + $0xc] sm:$0xf]
    %v667 = vld [vmem:[#allocation10 + $0x10] sm:$0xf]
    %v668 = vld [vmem:[#allocation10 + $0x14] sm:$0xf]
    %v669 = vld [vmem:[#allocation10 + $0x18] sm:$0xf]
    %v670 = vld [vmem:[#allocation10 + $0x1c] sm:$0xf]
    %v671 = vld [vmem:[#allocation10 + $0x20] sm:$0xf]
    %v672 = vld [vmem:[#allocation10 + $0x24] sm:$0xf]
    %v673 = vld [vmem:[#allocation10 + $0x28] sm:$0xf]
    %v674 = vld [vmem:[#allocation10 + $0x2c] sm:$0xf]
    %v675 = vld [vmem:[#allocation10 + $0x30] sm:$0xf]
    %v676 = vld [vmem:[#allocation10 + $0x34] sm:$0xf]
    %v677 = vld [vmem:[#allocation10 + $0x38] sm:$0xf]
    %v678 = vld [vmem:[#allocation10 + $0x3c] sm:$0xf]
    %v679 = vld [vmem:[%s8] sm:$0x1]
    %v681 = vlaneseq
    %v682 = vshrl.u32 %v681, 7
    %v683 = vsub.s32 0, %v682
    %v684 = vrot.slane %v679, %v683
    %v702 = vunpack.c.l.b16 %v663
    %v703 = vunpack.c.l.b16 %v664
    %v704 = vunpack.c.l.b16 %v665
    %v705 = vunpack.c.l.b16 %v666
    %v706 = vunpack.c.l.b16 %v667
    %v707 = vunpack.c.l.b16 %v668
    %v708 = vunpack.c.l.b16 %v669
    %v709 = vunpack.c.l.b16 %v670
    %v710 = vunpack.c.l.b16 %v671
    %v711 = vunpack.c.l.b16 %v672
    %v712 = vunpack.c.l.b16 %v673
    %v713 = vunpack.c.l.b16 %v674
    %v714 = vunpack.c.l.b16 %v675
    %v715 = vunpack.c.l.b16 %v676
    %v716 = vunpack.c.l.b16 %v677
    %v717 = vunpack.c.l.b16 %v678
    %v718 = vpack.c.b16 %v703, %v702
    %v719 = vpack.c.b16 %v705, %v704
    %v720 = vpack.c.b16 %v707, %v706
    %v721 = vpack.c.b16 %v709, %v708
    %v722 = vpack.c.b16 %v711, %v710
    %v723 = vpack.c.b16 %v713, %v712
    %v724 = vpack.c.b16 %v715, %v714
    %v725 = vpack.c.b16 %v717, %v716
    %734 = vmatprep.subr.bf16.mxu0 0
    %735 = vmatpush1.bf16.msra.mxu0 %v725
    %736 = vmatprep.subr.bf16.mxu0 0
    %737 = vmatpush1.bf16.msra.mxu0 %v724
    %738 = vmatprep.subr.bf16.mxu0 0
    %739 = vmatpush1.bf16.msra.mxu0 %v723
    %740 = vmatprep.subr.bf16.mxu0 0
    %741 = vmatpush1.bf16.msra.mxu0 %v722
    %742 = vmatprep.subr.bf16.mxu0 0
    %743 = vmatpush1.bf16.msra.mxu0 %v721
    %744 = vmatprep.subr.bf16.mxu0 0
    %745 = vmatpush1.bf16.msra.mxu0 %v720
    %746 = vmatprep.subr.bf16.mxu0 0
    %747 = vmatpush1.bf16.msra.mxu0 %v719
    %748 = vmatprep.subr.bf16.mxu0 0
    %749 = vmatpush1.bf16.msra.mxu0 %v718
    %750 = vmatprep.subr.bf16.mxu0 0
    %751 = vmatpush2.bf16.msra.mxu0 0
    %752 = vmatprep.subr.bf16.mxu0 0
    %753 = vmatpush2.bf16.msra.mxu0 0
    %754 = vmatprep.subr.bf16.mxu0 0
    %755 = vmatpush2.bf16.msra.mxu0 0
    %756 = vmatprep.subr.bf16.mxu0 0
    %757 = vmatpush2.bf16.msra.mxu0 0
    %758 = vmatprep.subr.bf16.mxu0 0
    %759 = vmatpush2.bf16.msra.mxu0 0
    %760 = vmatprep.subr.bf16.mxu0 0
    %761 = vmatpush2.bf16.msra.mxu0 0
    %762 = vmatprep.subr.bf16.mxu0 0
    %763 = vmatpush2.bf16.msra.mxu0 0
    %764 = vmatprep.subr.bf16.mxu0 0
    %765 = vmatpush2.bf16.msra.mxu0 0
    %766 = vmatprep.mubr.bf16.mxu0 0
    %767 = vmatmul.mubr.bf16.gmra.mxu0 %v655
    %v768 = vpop.f32.mrf.mxu0
    %v769 = vadd.f32 %v684, %v768
    %v770 = vpop.f32.mrf.mxu0
    %v771 = vpop.f32.mrf.mxu0
    %v772 = vadd.f32 %v684, %v771
    %v773 = vpop.f32.mrf.mxu0
    %774 = vmatprep.mubr.bf16.mxu0 0
    %775 = vmatmul.mubr.bf16.gmra.mxu0 %v656
    %v776 = vpop.f32.mrf.mxu0
    %v777 = vadd.f32 %v684, %v776
    %v778 = vpop.f32.mrf.mxu0
    %v779 = vpop.f32.mrf.mxu0
    %v780 = vadd.f32 %v684, %v779
    %v781 = vpop.f32.mrf.mxu0
    %782 = vmatprep.mubr.bf16.mxu0 0
    %783 = vmatmul.mubr.bf16.gmra.mxu0 %v657
    %v784 = vpop.f32.mrf.mxu0
    %v785 = vadd.f32 %v684, %v784
    %v786 = vpop.f32.mrf.mxu0
    %v787 = vpop.f32.mrf.mxu0
    %v788 = vadd.f32 %v684, %v787
    %v789 = vpop.f32.mrf.mxu0
    %790 = vmatprep.mubr.bf16.mxu0 0
    %791 = vmatmul.mubr.bf16.gmra.mxu0 %v658
    %v792 = vpop.f32.mrf.mxu0
    %v793 = vadd.f32 %v684, %v792
    %v794 = vpop.f32.mrf.mxu0
    %v795 = vpop.f32.mrf.mxu0
    %v796 = vadd.f32 %v684, %v795
    %v797 = vpop.f32.mrf.mxu0
    %798 = vmatprep.mubr.bf16.mxu0 0
    %799 = vmatmul.mubr.bf16.gmra.mxu0 %v659
    %v800 = vpop.f32.mrf.mxu0
    %v801 = vadd.f32 %v684, %v800
    %v802 = vpop.f32.mrf.mxu0
    %v803 = vpop.f32.mrf.mxu0
    %v804 = vadd.f32 %v684, %v803
    %v805 = vpop.f32.mrf.mxu0
    %806 = vmatprep.mubr.bf16.mxu0 0
    %807 = vmatmul.mubr.bf16.gmra.mxu0 %v660
    %v808 = vpop.f32.mrf.mxu0
    %v809 = vadd.f32 %v684, %v808
    %v810 = vpop.f32.mrf.mxu0
    %v811 = vpop.f32.mrf.mxu0
    %v812 = vadd.f32 %v684, %v811
    %v813 = vpop.f32.mrf.mxu0
    %814 = vmatprep.mubr.bf16.mxu0 0
    %815 = vmatmul.mubr.bf16.gmra.mxu0 %v661
    %v816 = vpop.f32.mrf.mxu0
    %v817 = vadd.f32 %v684, %v816
    %v818 = vpop.f32.mrf.mxu0
    %v819 = vpop.f32.mrf.mxu0
    %v820 = vadd.f32 %v684, %v819
    %v821 = vpop.f32.mrf.mxu0
    %822 = vmatprep.mubr.bf16.mxu0 0
    %823 = vmatmul.mubr.bf16.gmra.mxu0 %v662
    %v824 = vpop.f32.mrf.mxu0
    %v825 = vadd.f32 %v684, %v824
    %v826 = vpop.f32.mrf.mxu0
    %v827 = vpop.f32.mrf.mxu0
    %v828 = vadd.f32 %v684, %v827
    %v829 = vpop.f32.mrf.mxu0
    %830 = vdwg.mxu0
    %831 = vst [vmem:[#allocation11] sm:$0xff] %v769
    %832 = vst [vmem:[#allocation11 + $0x8] sm:$0xff] %v772
    %833 = vst [vmem:[#allocation11 + $0x10] sm:$0xff] %v777
    %834 = vst [vmem:[#allocation11 + $0x18] sm:$0xff] %v780
    %835 = vst [vmem:[#allocation11 + $0x20] sm:$0xff] %v785
    %836 = vst [vmem:[#allocation11 + $0x28] sm:$0xff] %v788
    %837 = vst [vmem:[#allocation11 + $0x30] sm:$0xff] %v793
    %838 = vst [vmem:[#allocation11 + $0x38] sm:$0xff] %v796
    %839 = vst [vmem:[#allocation11 + $0x40] sm:$0xff] %v801
    %840 = vst [vmem:[#allocation11 + $0x48] sm:$0xff] %v804
    %841 = vst [vmem:[#allocation11 + $0x50] sm:$0xff] %v809
    %842 = vst [vmem:[#allocation11 + $0x58] sm:$0xff] %v812
    %843 = vst [vmem:[#allocation11 + $0x60] sm:$0xff] %v817
    %844 = vst [vmem:[#allocation11 + $0x68] sm:$0xff] %v820
    %845 = vst [vmem:[#allocation11 + $0x70] sm:$0xff] %v825
    %846 = vst [vmem:[#allocation11 + $0x78] sm:$0xff] %v828
    // Predicated region
    $region58: #{tpu_custom_call.1} parent=1 // pred_check
      _
    $region59: #{tpu_custom_call.1} parent=1 // pred_check_branch
      %848 = sbr.rel (0) target = $region61
    $region60: #{tpu_custom_call.1} parent=1 // pred_region
      %s850 = ssub.s32 2048, 2048
      %851 = vsyncadd [#allocation4], %s850
      %s852 = sshll.u32 [#allocation11], 4
      %s853 = int_to_ptr.vmem [resolvable:$true] %s852
      %858 = dma.vmem_to_hbm [thread:$0]  %s853, 2048, %s9, [#allocation4], 128, 128, 8
    $region61: #{tpu_custom_call.1} parent=1 // pred_fallthru
      _
    // Predicated region
    $region62: #{tpu_custom_call.1} parent=1 // pred_check
      _
    $region63: #{tpu_custom_call.1} parent=1 // pred_check_branch
      %860 = sbr.rel (0) target = $region65
    $region64: #{tpu_custom_call.1} parent=1 // pred_region
      %861 = dma.done [#allocation4], 2048
    $region65: #{tpu_custom_call.1} parent=1 // pred_fallthru
      _
    %862 = vsyncpa [#allocation3], 1
    %863 = vsyncpa [#allocation6], 1
    %864 = vsyncpa [#allocation9], 1
    %865 = vsyncpa [#allocation4], 1

// kernel: tpu_custom_call.1
$region0: #{tpu_custom_call.1}
  #allocation0 [shape = 'u32[]', space=smem, size = 0x4, offset = 0x4, fixed_abs, tag = 'smem constant byte address 0x4 - core index']
  #allocation1 [shape = 'u32[144,128]{1,0:T(1,128)}', space=vmem, size = 0x12000, scoped, tag = 'internal scratch']
  %s0 = inlined_call_operand.hbm [shape: f32[8,32], index: 0, kind: input, shape index: {}]
  %s1 = inlined_call_operand.hbm [shape: bf16[32,128], index: 1, kind: input, shape index: {}]
  %s2 = inlined_call_operand.vmem [shape: f32[1,128], index: 2, kind: input, shape index: {}]
  %s3 = inlined_call_operand.hbm [shape: bf16[1,128,128], index: 3, kind: input, shape index: {}]
  %s4 = inlined_call_operand.vmem [shape: f32[1,1,128], index: 4, kind: input, shape index: {}]
  %s5 = inlined_call_operand.hbm [shape: bf16[128,128], index: 5, kind: input, shape index: {}]
  %s6 = inlined_call_operand.vmem [shape: f32[1,128], index: 6, kind: input, shape index: {}]
  %s7 = inlined_call_operand.hbm [shape: bf16[128,128], index: 7, kind: input, shape index: {}]
  %s8 = inlined_call_operand.vmem [shape: f32[1,128], index: 8, kind: input, shape index: {}]
  %s9 = inlined_call_operand.hbm [shape: f32[128,128], index: 9, kind: output, shape index: {}]
  %s10 = sld [smem:[#allocation0]]
  $region66: #{tpu_custom_call.1} parent=0
    _
  %s12 = ssub.s32 1, %s10
  %s13 = scalar_select 0, %s12, %s10
  $region1: #{tpu_custom_call.1} parent=0
    #allocation2 [shape = 'u8[65536]{0}', space=vmem, size = 0x10000, scoped, tag = 'input window, operand 0, single buffered']
    #allocation3 [shape = 's32[1]{0}', space=sflag, size = 0x4, scoped, tag = 'scoped memory for tpu_custom_call.1']
    #allocation4 [shape = 's32[1]{0}', space=sflag, size = 0x4, scoped, tag = 'scoped memory for tpu_custom_call.1']
    #allocation5 [shape = 'u8[8192]{0}', space=vmem, size = 0x2000, scoped, tag = 'input window, operand 1, single buffered']
    #allocation6 [shape = 's32[1]{0}', space=sflag, size = 0x4, scoped, tag = 'scoped memory for tpu_custom_call.1']
    #allocation7 [shape = 'u8[32768]{0}', space=vmem, size = 0x8000, scoped, tag = 'input window, operand 3, single buffered']
    #allocation8 [shape = 'u8[32768]{0}', space=vmem, size = 0x8000, scoped, tag = 'input window, operand 5, single buffered']
    #allocation9 [shape = 's32[1]{0}', space=sflag, size = 0x4, scoped, tag = 'scoped memory for tpu_custom_call.1']
    #allocation10 [shape = 'u8[32768]{0}', space=vmem, size = 0x8000, scoped, tag = 'input window, operand 7, single buffered']
    #allocation11 [shape = 'u8[65536]{0}', space=vmem, size = 0x10000, scoped, tag = 'output window, operand 0, single buffered']
    %14 = vsyncpa [#allocation3], 0
    %15 = vsyncpa [#allocation6], 0
    %16 = vsyncpa [#allocation9], 0
    %17 = vsyncpa [#allocation4], 0
    // Predicated region
    $region2: #{tpu_custom_call.1} parent=1 // pred_check
      _
    $region3: #{tpu_custom_call.1} parent=1 // pred_check_branch
      %19 = sbr.rel (0) target = $region5
    $region4: #{tpu_custom_call.1} parent=1 // pred_region
      %s21 = ssub.s32 2048, 128
      %22 = vsyncadd [#allocation3], %s21
      %s23 = sshll.u32 [#allocation2], 4
      %s24 = int_to_ptr.vmem [resolvable:$true] %s23
      %29 = dma.hbm_to_vmem [thread:$0]  %s0, 128, %s24, [#allocation3], 128, 128, 8
    $region5: #{tpu_custom_call.1} parent=1 // pred_fallthru
      _
    // Predicated region
    $region6: #{tpu_custom_call.1} parent=1 // pred_check
      _
    $region7: #{tpu_custom_call.1} parent=1 // pred_check_branch
      %31 = sbr.rel (0) target = $region9
    $region8: #{tpu_custom_call.1} parent=1 // pred_region
      %s33 = ssub.s32 256, 256
      %34 = vsyncadd [#allocation6], %s33
      %s35 = sshll.u32 [#allocation5], 4
      %s36 = int_to_ptr.vmem [resolvable:$true] %s35
      %41 = dma.hbm_to_vmem [thread:$0]  %s1, 256, %s36, [#allocation6], 64, 64, 4
    $region9: #{tpu_custom_call.1} parent=1 // pred_fallthru
      _
    // Predicated region
    $region10: #{tpu_custom_call.1} parent=1 // pred_check
      _
    $region11: #{tpu_custom_call.1} parent=1 // pred_check_branch
      %43 = sbr.rel (0) target = $region13
    $region12: #{tpu_custom_call.1} parent=1 // pred_region
      _
    $region13: #{tpu_custom_call.1} parent=1 // pred_fallthru
      _
    // Predicated region
    $region14: #{tpu_custom_call.1} parent=1 // pred_check
      _
    $region15: #{tpu_custom_call.1} parent=1 // pred_check_branch
      %45 = sbr.rel (0) target = $region17
    $region16: #{tpu_custom_call.1} parent=1 // pred_region
      %s47 = ssub.s32 1024, 1024
      %48 = vsyncadd [#allocation6], %s47
      %s49 = sshll.u32 [#allocation7], 4
      %s50 = int_to_ptr.vmem [resolvable:$true] %s49
      %55 = dma.hbm_to_vmem [thread:$0]  %s3, 1024, %s50, [#allocation6], 64, 64, 4
    $region17: #{tpu_custom_call.1} parent=1 // pred_fallthru
      _
    // Predicated region
    $region18: #{tpu_custom_call.1} parent=1 // pred_check
      _
    $region19: #{tpu_custom_call.1} parent=1 // pred_check_branch
      %57 = sbr.rel (0) target = $region21
    $region20: #{tpu_custom_call.1} parent=1 // pred_region
      _
    $region21: #{tpu_custom_call.1} parent=1 // pred_fallthru
      _
    // Predicated region
    $region22: #{tpu_custom_call.1} parent=1 // pred_check
      _
    $region23: #{tpu_custom_call.1} parent=1 // pred_check_branch
      %59 = sbr.rel (0) target = $region25
    $region24: #{tpu_custom_call.1} parent=1 // pred_region
      %s61 = ssub.s32 1024, 1024
      %62 = vsyncadd [#allocation9], %s61
      %s63 = sshll.u32 [#allocation8], 4
      %s64 = int_to_ptr.vmem [resolvable:$true] %s63
      %69 = dma.hbm_to_vmem [thread:$0]  %s5, 1024, %s64, [#allocation9], 64, 64, 4
    $region25: #{tpu_custom_call.1} parent=1 // pred_fallthru
      _
    // Predicated region
    $region26: #{tpu_custom_call.1} parent=1 // pred_check
      _
    $region27: #{tpu_custom_call.1} parent=1 // pred_check_branch
      %71 = sbr.rel (0) target = $region29
    $region28: #{tpu_custom_call.1} parent=1 // pred_region
      _
    $region29: #{tpu_custom_call.1} parent=1 // pred_fallthru
      _
    // Predicated region
    $region30: #{tpu_custom_call.1} parent=1 // pred_check
      _
    $region31: #{tpu_custom_call.1} parent=1 // pred_check_branch
      %73 = sbr.rel (0) target = $region33
    $region32: #{tpu_custom_call.1} parent=1 // pred_region
      %s75 = ssub.s32 1024, 1024
      %76 = vsyncadd [#allocation9], %s75
      %s77 = sshll.u32 [#allocation10], 4
      %s78 = int_to_ptr.vmem [resolvable:$true] %s77
      %83 = dma.hbm_to_vmem [thread:$0]  %s7, 1024, %s78, [#allocation9], 64, 64, 4
    $region33: #{tpu_custom_call.1} parent=1 // pred_fallthru
      _
    // Predicated region
    $region34: #{tpu_custom_call.1} parent=1 // pred_check
      _
    $region35: #{tpu_custom_call.1} parent=1 // pred_check_branch
      %85 = sbr.rel (0) target = $region37
    $region36: #{tpu_custom_call.1} parent=1 // pred_region
      _
    $region37: #{tpu_custom_call.1} parent=1 // pred_fallthru
      _
    // Predicated region
    $region38: #{tpu_custom_call.1} parent=1 // pred_check
      _
    $region39: #{tpu_custom_call.1} parent=1 // pred_check_branch
      %87 = sbr.rel (0) target = $region41
    $region40: #{tpu_custom_call.1} parent=1 // pred_region
      %88 = dma.done [#allocation3], 2048
    $region41: #{tpu_custom_call.1} parent=1 // pred_fallthru
      _
    // Predicated region
    $region42: #{tpu_custom_call.1} parent=1 // pred_check
      _
    $region43: #{tpu_custom_call.1} parent=1 // pred_check_branch
      %90 = sbr.rel (0) target = $region45
    $region44: #{tpu_custom_call.1} parent=1 // pred_region
      %91 = dma.done [#allocation6], 256
    $region45: #{tpu_custom_call.1} parent=1 // pred_fallthru
      _
    // Predicated region
    $region46: #{tpu_custom_call.1} parent=1 // pred_check
      _
    $region47: #{tpu_custom_call.1} parent=1 // pred_check_branch
      %93 = sbr.rel (0) target = $region49
    $region48: #{tpu_custom_call.1} parent=1 // pred_region
      %94 = dma.done [#allocation6], 1024
    $region49: #{tpu_custom_call.1} parent=1 // pred_fallthru
      _
    // Predicated region
    $region50: #{tpu_custom_call.1} parent=1 // pred_check
      _
    $region51: #{tpu_custom_call.1} parent=1 // pred_check_branch
      %96 = sbr.rel (0) target = $region53
    $region52: #{tpu_custom_call.1} parent=1 // pred_region
      %97 = dma.done [#allocation9], 1024
    $region53: #{tpu_custom_call.1} parent=1 // pred_fallthru
      _
    // Predicated region
    $region54: #{tpu_custom_call.1} parent=1 // pred_check
      _
    $region55: #{tpu_custom_call.1} parent=1 // pred_check_branch
      %99 = sbr.rel (0) target = $region57
    $region56: #{tpu_custom_call.1} parent=1 // pred_region
      %100 = dma.done [#allocation9], 1024
    $region57: #{tpu_custom_call.1} parent=1 // pred_fallthru
      _
    %v102 = vld [vmem:[#allocation2] sm:$0xff]
    %v103 = vld [vmem:[#allocation2 + $0x8] sm:$0xff]
    %v104 = vld [vmem:[#allocation2 + $0x10] sm:$0xff]
    %v105 = vld [vmem:[#allocation2 + $0x18] sm:$0xff]
    %v106 = vld [vmem:[#allocation2 + $0x20] sm:$0xff]
    %v107 = vld [vmem:[#allocation2 + $0x28] sm:$0xff]
    %v108 = vld [vmem:[#allocation2 + $0x30] sm:$0xff]
    %v109 = vld [vmem:[#allocation2 + $0x38] sm:$0xff]
    %v110 = vld [vmem:[#allocation2 + $0x40] sm:$0xff]
    %v111 = vld [vmem:[#allocation2 + $0x48] sm:$0xff]
    %v112 = vld [vmem:[#allocation2 + $0x50] sm:$0xff]
    %v113 = vld [vmem:[#allocation2 + $0x58] sm:$0xff]
    %v114 = vld [vmem:[#allocation2 + $0x60] sm:$0xff]
    %v115 = vld [vmem:[#allocation2 + $0x68] sm:$0xff]
    %v116 = vld [vmem:[#allocation2 + $0x70] sm:$0xff]
    %v117 = vld [vmem:[#allocation2 + $0x78] sm:$0xff]
    %v118 = vpack.c.bf16 %v103, %v102
    %v119 = vpack.c.bf16 %v105, %v104
    %v120 = vpack.c.bf16 %v107, %v106
    %v121 = vpack.c.bf16 %v109, %v108
    %v122 = vpack.c.bf16 %v111, %v110
    %v123 = vpack.c.bf16 %v113, %v112
    %v124 = vpack.c.bf16 %v115, %v114
    %v125 = vpack.c.bf16 %v117, %v116
    %v126 = vld [vmem:[#allocation5] sm:$0xf]
    %v127 = vld [vmem:[#allocation5 + $0x4] sm:$0xf]
    %v128 = vld [vmem:[#allocation5 + $0x8] sm:$0xf]
    %v129 = vld [vmem:[#allocation5 + $0xc] sm:$0xf]
    %v130 = vld [vmem:[%s2] sm:$0x1]
    %v132 = vlaneseq
    %v133 = vshrl.u32 %v132, 7
    %v134 = vsub.s32 0, %v133
    %v135 = vrot.slane %v130, %v134
    %v141 = vunpack.c.l.b16 %v126
    %v142 = vunpack.c.l.b16 %v127
    %v143 = vunpack.c.l.b16 %v128
    %v144 = vunpack.c.l.b16 %v129
    %v145 = vpack.c.b16 %v142, %v141
    %v146 = vpack.c.b16 %v144, %v143
    %vm149 = vcmask 261120
    %v151 = vsel %vm149, %v118, 0
    %v154 = vsel %vm149, %v119, 0
    %v157 = vsel %vm149, %v120, 0
    %v160 = vsel %vm149, %v121, 0
    %v163 = vsel %vm149, %v122, 0
    %v166 = vsel %vm149, %v123, 0
    %v169 = vsel %vm149, %v124, 0
    %v172 = vsel %vm149, %v125, 0
    %174 = vmatprep.subr.bf16.mxu0 0
    %175 = vmatpush1.bf16.msra.mxu0 0
    %176 = vmatprep.subr.bf16.mxu0 0
    %177 = vmatpush1.bf16.msra.mxu0 0
    %178 = vmatprep.subr.bf16.mxu0 0
    %179 = vmatpush1.bf16.msra.mxu0 0
    %180 = vmatprep.subr.bf16.mxu0 0
    %181 = vmatpush1.bf16.msra.mxu0 0
    %182 = vmatprep.subr.bf16.mxu0 0
    %183 = vmatpush1.bf16.msra.mxu0 0
    %184 = vmatprep.subr.bf16.mxu0 0
    %185 = vmatpush1.bf16.msra.mxu0 0
    %186 = vmatprep.subr.bf16.mxu0 0
    %187 = vmatpush1.bf16.msra.mxu0 %v146
    %188 = vmatprep.subr.bf16.mxu0 0
    %189 = vmatpush1.bf16.msra.mxu0 %v145
    %190 = vmatprep.subr.bf16.mxu0 0
    %191 = vmatpush2.bf16.msra.mxu0 0
    %192 = vmatprep.subr.bf16.mxu0 0
    %193 = vmatpush2.bf16.msra.mxu0 0
    %194 = vmatprep.subr.bf16.mxu0 0
    %195 = vmatpush2.bf16.msra.mxu0 0
    %196 = vmatprep.subr.bf16.mxu0 0
    %197 = vmatpush2.bf16.msra.mxu0 0
    %198 = vmatprep.subr.bf16.mxu0 0
    %199 = vmatpush2.bf16.msra.mxu0 0
    %200 = vmatprep.subr.bf16.mxu0 0
    %201 = vmatpush2.bf16.msra.mxu0 0
    %202 = vmatprep.subr.bf16.mxu0 0
    %203 = vmatpush2.bf16.msra.mxu0 0
    %204 = vmatprep.subr.bf16.mxu0 0
    %205 = vmatpush2.bf16.msra.mxu0 0
    %206 = vmatprep.mubr.bf16.mxu0 0
    %207 = vmatmul.mubr.bf16.gmra.mxu0 %v151
    %v208 = vpop.f32.mrf.mxu0
    %v209 = vadd.f32 %v135, %v208
    %v210 = vpop.f32.mrf.mxu0
    %v211 = vpop.f32.mrf.mxu0
    %v212 = vadd.f32 %v135, %v211
    %v213 = vpop.f32.mrf.mxu0
    %214 = vmatprep.mubr.bf16.mxu0 0
    %215 = vmatmul.mubr.bf16.gmra.mxu0 %v154
    %v216 = vpop.f32.mrf.mxu0
    %v217 = vadd.f32 %v135, %v216
    %v218 = vpop.f32.mrf.mxu0
    %v219 = vpop.f32.mrf.mxu0
    %v220 = vadd.f32 %v135, %v219
    %v221 = vpop.f32.mrf.mxu0
    %222 = vmatprep.mubr.bf16.mxu0 0
    %223 = vmatmul.mubr.bf16.gmra.mxu0 %v157
    %v224 = vpop.f32.mrf.mxu0
    %v225 = vadd.f32 %v135, %v224
    %v226 = vpop.f32.mrf.mxu0
    %v227 = vpop.f32.mrf.mxu0
    %v228 = vadd.f32 %v135, %v227
    %v229 = vpop.f32.mrf.mxu0
    %230 = vmatprep.mubr.bf16.mxu0 0
    %231 = vmatmul.mubr.bf16.gmra.mxu0 %v160
    %v232 = vpop.f32.mrf.mxu0
    %v233 = vadd.f32 %v135, %v232
    %v234 = vpop.f32.mrf.mxu0
    %v235 = vpop.f32.mrf.mxu0
    %v236 = vadd.f32 %v135, %v235
    %v237 = vpop.f32.mrf.mxu0
    %238 = vmatprep.mubr.bf16.mxu0 0
    %239 = vmatmul.mubr.bf16.gmra.mxu0 %v163
    %v240 = vpop.f32.mrf.mxu0
    %v241 = vadd.f32 %v135, %v240
    %v242 = vpop.f32.mrf.mxu0
    %v243 = vpop.f32.mrf.mxu0
    %v244 = vadd.f32 %v135, %v243
    %v245 = vpop.f32.mrf.mxu0
    %246 = vmatprep.mubr.bf16.mxu0 0
    %247 = vmatmul.mubr.bf16.gmra.mxu0 %v166
    %v248 = vpop.f32.mrf.mxu0
    %v249 = vadd.f32 %v135, %v248
    %v250 = vpop.f32.mrf.mxu0
    %v251 = vpop.f32.mrf.mxu0
    %v252 = vadd.f32 %v135, %v251
    %v253 = vpop.f32.mrf.mxu0
    %254 = vmatprep.mubr.bf16.mxu0 0
    %255 = vmatmul.mubr.bf16.gmra.mxu0 %v169
    %v256 = vpop.f32.mrf.mxu0
    %v257 = vadd.f32 %v135, %v256
    %v258 = vpop.f32.mrf.mxu0
    %v259 = vpop.f32.mrf.mxu0
    %v260 = vadd.f32 %v135, %v259
    %v261 = vpop.f32.mrf.mxu0
    %262 = vmatprep.mubr.bf16.mxu0 0
    %263 = vmatmul.mubr.bf16.gmra.mxu0 %v172
    %v264 = vpop.f32.mrf.mxu0
    %v265 = vadd.f32 %v135, %v264
    %v266 = vpop.f32.mrf.mxu0
    %v267 = vpop.f32.mrf.mxu0
    %v268 = vadd.f32 %v135, %v267
    %v269 = vpop.f32.mrf.mxu0
    %270 = vdwg.mxu0
    %v271 = vmax.f32 %v209, 0.0
    %v272 = vmax.f32 %v212, 0.0
    %v273 = vmax.f32 %v217, 0.0
    %v274 = vmax.f32 %v220, 0.0
    %v275 = vmax.f32 %v225, 0.0
    %v276 = vmax.f32 %v228, 0.0
    %v277 = vmax.f32 %v233, 0.0
    %v278 = vmax.f32 %v236, 0.0
    %v279 = vmax.f32 %v241, 0.0
    %v280 = vmax.f32 %v244, 0.0
    %v281 = vmax.f32 %v249, 0.0
    %v282 = vmax.f32 %v252, 0.0
    %v283 = vmax.f32 %v257, 0.0
    %v284 = vmax.f32 %v260, 0.0
    %v285 = vmax.f32 %v265, 0.0
    %v286 = vmax.f32 %v268, 0.0
    %v287 = vpack.c.bf16 %v272, %v271
    %v288 = vpack.c.bf16 %v274, %v273
    %v289 = vpack.c.bf16 %v276, %v275
    %v290 = vpack.c.bf16 %v278, %v277
    %v291 = vpack.c.bf16 %v280, %v279
    %v292 = vpack.c.bf16 %v282, %v281
    %v293 = vpack.c.bf16 %v284, %v283
    %v294 = vpack.c.bf16 %v286, %v285
    %v295 = vld [vmem:[#allocation7] sm:$0xf]
    %v296 = vld [vmem:[#allocation7 + $0x4] sm:$0xf]
    %v297 = vld [vmem:[#allocation7 + $0x8] sm:$0xf]
    %v298 = vld [vmem:[#allocation7 + $0xc] sm:$0xf]
    %v299 = vld [vmem:[#allocation7 + $0x10] sm:$0xf]
    %v300 = vld [vmem:[#allocation7 + $0x14] sm:$0xf]
    %v301 = vld [vmem:[#allocation7 + $0x18] sm:$0xf]
    %v302 = vld [vmem:[#allocation7 + $0x1c] sm:$0xf]
    %v303 = vld [vmem:[#allocation7 + $0x20] sm:$0xf]
    %v304 = vld [vmem:[#allocation7 + $0x24] sm:$0xf]
    %v305 = vld [vmem:[#allocation7 + $0x28] sm:$0xf]
    %v306 = vld [vmem:[#allocation7 + $0x2c] sm:$0xf]
    %v307 = vld [vmem:[#allocation7 + $0x30] sm:$0xf]
    %v308 = vld [vmem:[#allocation7 + $0x34] sm:$0xf]
    %v309 = vld [vmem:[#allocation7 + $0x38] sm:$0xf]
    %v310 = vld [vmem:[#allocation7 + $0x3c] sm:$0xf]
    %v311 = vld [vmem:[%s4] sm:$0x1]
    %v313 = vlaneseq
    %v314 = vshrl.u32 %v313, 7
    %v315 = vsub.s32 0, %v314
    %v316 = vrot.slane %v311, %v315
    %v334 = vunpack.c.l.b16 %v295
    %v335 = vunpack.c.l.b16 %v296
    %v336 = vunpack.c.l.b16 %v297
    %v337 = vunpack.c.l.b16 %v298
    %v338 = vunpack.c.l.b16 %v299
    %v339 = vunpack.c.l.b16 %v300
    %v340 = vunpack.c.l.b16 %v301
    %v341 = vunpack.c.l.b16 %v302
    %v342 = vunpack.c.l.b16 %v303
    %v343 = vunpack.c.l.b16 %v304
    %v344 = vunpack.c.l.b16 %v305
    %v345 = vunpack.c.l.b16 %v306
    %v346 = vunpack.c.l.b16 %v307
    %v347 = vunpack.c.l.b16 %v308
    %v348 = vunpack.c.l.b16 %v309
    %v349 = vunpack.c.l.b16 %v310
    %v350 = vpack.c.b16 %v335, %v334
    %v351 = vpack.c.b16 %v337, %v336
    %v352 = vpack.c.b16 %v339, %v338
    %v353 = vpack.c.b16 %v341, %v340
    %v354 = vpack.c.b16 %v343, %v342
    %v355 = vpack.c.b16 %v345, %v344
    %v356 = vpack.c.b16 %v347, %v346
    %v357 = vpack.c.b16 %v349, %v348
    %366 = vmatprep.subr.bf16.mxu0 0
    %367 = vmatpush1.bf16.msra.mxu0 %v357
    %368 = vmatprep.subr.bf16.mxu0 0
    %369 = vmatpush1.bf16.msra.mxu0 %v356
    %370 = vmatprep.subr.bf16.mxu0 0
    %371 = vmatpush1.bf16.msra.mxu0 %v355
    %372 = vmatprep.subr.bf16.mxu0 0
    %373 = vmatpush1.bf16.msra.mxu0 %v354
    %374 = vmatprep.subr.bf16.mxu0 0
    %375 = vmatpush1.bf16.msra.mxu0 %v353
    %376 = vmatprep.subr.bf16.mxu0 0
    %377 = vmatpush1.bf16.msra.mxu0 %v352
    %378 = vmatprep.subr.bf16.mxu0 0
    %379 = vmatpush1.bf16.msra.mxu0 %v351
    %380 = vmatprep.subr.bf16.mxu0 0
    %381 = vmatpush1.bf16.msra.mxu0 %v350
    %382 = vmatprep.subr.bf16.mxu0 0
    %383 = vmatpush2.bf16.msra.mxu0 0
    %384 = vmatprep.subr.bf16.mxu0 0
    %385 = vmatpush2.bf16.msra.mxu0 0
    %386 = vmatprep.subr.bf16.mxu0 0
    %387 = vmatpush2.bf16.msra.mxu0 0
    %388 = vmatprep.subr.bf16.mxu0 0
    %389 = vmatpush2.bf16.msra.mxu0 0
    %390 = vmatprep.subr.bf16.mxu0 0
    %391 = vmatpush2.bf16.msra.mxu0 0
    %392 = vmatprep.subr.bf16.mxu0 0
    %393 = vmatpush2.bf16.msra.mxu0 0
    %394 = vmatprep.subr.bf16.mxu0 0
    %395 = vmatpush2.bf16.msra.mxu0 0
    %396 = vmatprep.subr.bf16.mxu0 0
    %397 = vmatpush2.bf16.msra.mxu0 0
    %398 = vmatprep.mubr.bf16.mxu0 0
    %399 = vmatmul.mubr.bf16.gmra.mxu0 %v287
    %v400 = vpop.f32.mrf.mxu0
    %v401 = vadd.f32 %v316, %v400
    %v402 = vpop.f32.mrf.mxu0
    %v403 = vpop.f32.mrf.mxu0
    %v404 = vadd.f32 %v316, %v403
    %v405 = vpop.f32.mrf.mxu0
    %406 = vmatprep.mubr.bf16.mxu0 0
    %407 = vmatmul.mubr.bf16.gmra.mxu0 %v288
    %v408 = vpop.f32.mrf.mxu0
    %v409 = vadd.f32 %v316, %v408
    %v410 = vpop.f32.mrf.mxu0
    %v411 = vpop.f32.mrf.mxu0
    %v412 = vadd.f32 %v316, %v411
    %v413 = vpop.f32.mrf.mxu0
    %414 = vmatprep.mubr.bf16.mxu0 0
    %415 = vmatmul.mubr.bf16.gmra.mxu0 %v289
    %v416 = vpop.f32.mrf.mxu0
    %v417 = vadd.f32 %v316, %v416
    %v418 = vpop.f32.mrf.mxu0
    %v419 = vpop.f32.mrf.mxu0
    %v420 = vadd.f32 %v316, %v419
    %v421 = vpop.f32.mrf.mxu0
    %422 = vmatprep.mubr.bf16.mxu0 0
    %423 = vmatmul.mubr.bf16.gmra.mxu0 %v290
    %v424 = vpop.f32.mrf.mxu0
    %v425 = vadd.f32 %v316, %v424
    %v426 = vpop.f32.mrf.mxu0
    %v427 = vpop.f32.mrf.mxu0
    %v428 = vadd.f32 %v316, %v427
    %v429 = vpop.f32.mrf.mxu0
    %430 = vmatprep.mubr.bf16.mxu0 0
    %431 = vmatmul.mubr.bf16.gmra.mxu0 %v291
    %v432 = vpop.f32.mrf.mxu0
    %v433 = vadd.f32 %v316, %v432
    %v434 = vpop.f32.mrf.mxu0
    %v435 = vpop.f32.mrf.mxu0
    %v436 = vadd.f32 %v316, %v435
    %v437 = vpop.f32.mrf.mxu0
    %438 = vmatprep.mubr.bf16.mxu0 0
    %439 = vmatmul.mubr.bf16.gmra.mxu0 %v292
    %v440 = vpop.f32.mrf.mxu0
    %v441 = vadd.f32 %v316, %v440
    %v442 = vpop.f32.mrf.mxu0
    %v443 = vpop.f32.mrf.mxu0
    %v444 = vadd.f32 %v316, %v443
    %v445 = vpop.f32.mrf.mxu0
    %446 = vmatprep.mubr.bf16.mxu0 0
    %447 = vmatmul.mubr.bf16.gmra.mxu0 %v293
    %v448 = vpop.f32.mrf.mxu0
    %v449 = vadd.f32 %v316, %v448
    %v450 = vpop.f32.mrf.mxu0
    %v451 = vpop.f32.mrf.mxu0
    %v452 = vadd.f32 %v316, %v451
    %v453 = vpop.f32.mrf.mxu0
    %454 = vmatprep.mubr.bf16.mxu0 0
    %455 = vmatmul.mubr.bf16.gmra.mxu0 %v294
    %v456 = vpop.f32.mrf.mxu0
    %v457 = vadd.f32 %v316, %v456
    %v458 = vpop.f32.mrf.mxu0
    %v459 = vpop.f32.mrf.mxu0
    %v460 = vadd.f32 %v316, %v459
    %v461 = vpop.f32.mrf.mxu0
    %462 = vdwg.mxu0
    %v463 = vmax.f32 %v401, 0.0
    %v464 = vmax.f32 %v404, 0.0
    %v465 = vmax.f32 %v409, 0.0
    %v466 = vmax.f32 %v412, 0.0
    %v467 = vmax.f32 %v417, 0.0
    %v468 = vmax.f32 %v420, 0.0
    %v469 = vmax.f32 %v425, 0.0
    %v470 = vmax.f32 %v428, 0.0
    %v471 = vmax.f32 %v433, 0.0
    %v472 = vmax.f32 %v436, 0.0
    %v473 = vmax.f32 %v441, 0.0
    %v474 = vmax.f32 %v444, 0.0
    %v475 = vmax.f32 %v449, 0.0
    %v476 = vmax.f32 %v452, 0.0
    %v477 = vmax.f32 %v457, 0.0
    %v478 = vmax.f32 %v460, 0.0
    %v479 = vpack.c.bf16 %v464, %v463
    %v480 = vpack.c.bf16 %v466, %v465
    %v481 = vpack.c.bf16 %v468, %v467
    %v482 = vpack.c.bf16 %v470, %v469
    %v483 = vpack.c.bf16 %v472, %v471
    %v484 = vpack.c.bf16 %v474, %v473
    %v485 = vpack.c.bf16 %v476, %v475
    %v486 = vpack.c.bf16 %v478, %v477
    %v487 = vld [vmem:[#allocation8] sm:$0xf]
    %v488 = vld [vmem:[#allocation8 + $0x4] sm:$0xf]
    %v489 = vld [vmem:[#allocation8 + $0x8] sm:$0xf]
    %v490 = vld [vmem:[#allocation8 + $0xc] sm:$0xf]
    %v491 = vld [vmem:[#allocation8 + $0x10] sm:$0xf]
    %v492 = vld [vmem:[#allocation8 + $0x14] sm:$0xf]
    %v493 = vld [vmem:[#allocation8 + $0x18] sm:$0xf]
    %v494 = vld [vmem:[#allocation8 + $0x1c] sm:$0xf]
    %v495 = vld [vmem:[#allocation8 + $0x20] sm:$0xf]
    %v496 = vld [vmem:[#allocation8 + $0x24] sm:$0xf]
    %v497 = vld [vmem:[#allocation8 + $0x28] sm:$0xf]
    %v498 = vld [vmem:[#allocation8 + $0x2c] sm:$0xf]
    %v499 = vld [vmem:[#allocation8 + $0x30] sm:$0xf]
    %v500 = vld [vmem:[#allocation8 + $0x34] sm:$0xf]
    %v501 = vld [vmem:[#allocation8 + $0x38] sm:$0xf]
    %v502 = vld [vmem:[#allocation8 + $0x3c] sm:$0xf]
    %v503 = vld [vmem:[%s6] sm:$0x1]
    %v505 = vlaneseq
    %v506 = vshrl.u32 %v505, 7
    %v507 = vsub.s32 0, %v506
    %v508 = vrot.slane %v503, %v507
    %v526 = vunpack.c.l.b16 %v487
    %v527 = vunpack.c.l.b16 %v488
    %v528 = vunpack.c.l.b16 %v489
    %v529 = vunpack.c.l.b16 %v490
    %v530 = vunpack.c.l.b16 %v491
    %v531 = vunpack.c.l.b16 %v492
    %v532 = vunpack.c.l.b16 %v493
    %v533 = vunpack.c.l.b16 %v494
    %v534 = vunpack.c.l.b16 %v495
    %v535 = vunpack.c.l.b16 %v496
    %v536 = vunpack.c.l.b16 %v497
    %v537 = vunpack.c.l.b16 %v498
    %v538 = vunpack.c.l.b16 %v499
    %v539 = vunpack.c.l.b16 %v500
    %v540 = vunpack.c.l.b16 %v501
    %v541 = vunpack.c.l.b16 %v502
    %v542 = vpack.c.b16 %v527, %v526
    %v543 = vpack.c.b16 %v529, %v528
    %v544 = vpack.c.b16 %v531, %v530
    %v545 = vpack.c.b16 %v533, %v532
    %v546 = vpack.c.b16 %v535, %v534
    %v547 = vpack.c.b16 %v537, %v536
    %v548 = vpack.c.b16 %v539, %v538
    %v549 = vpack.c.b16 %v541, %v540
    %558 = vmatprep.subr.bf16.mxu0 0
    %559 = vmatpush1.bf16.msra.mxu0 %v549
    %560 = vmatprep.subr.bf16.mxu0 0
    %561 = vmatpush1.bf16.msra.mxu0 %v548
    %562 = vmatprep.subr.bf16.mxu0 0
    %563 = vmatpush1.bf16.msra.mxu0 %v547
    %564 = vmatprep.subr.bf16.mxu0 0
    %565 = vmatpush1.bf16.msra.mxu0 %v546
    %566 = vmatprep.subr.bf16.mxu0 0
    %567 = vmatpush1.bf16.msra.mxu0 %v545
    %568 = vmatprep.subr.bf16.mxu0 0
    %569 = vmatpush1.bf16.msra.mxu0 %v544
    %570 = vmatprep.subr.bf16.mxu0 0
    %571 = vmatpush1.bf16.msra.mxu0 %v543
    %572 = vmatprep.subr.bf16.mxu0 0
    %573 = vmatpush1.bf16.msra.mxu0 %v542
    %574 = vmatprep.subr.bf16.mxu0 0
    %575 = vmatpush2.bf16.msra.mxu0 0
    %576 = vmatprep.subr.bf16.mxu0 0
    %577 = vmatpush2.bf16.msra.mxu0 0
    %578 = vmatprep.subr.bf16.mxu0 0
    %579 = vmatpush2.bf16.msra.mxu0 0
    %580 = vmatprep.subr.bf16.mxu0 0
    %581 = vmatpush2.bf16.msra.mxu0 0
    %582 = vmatprep.subr.bf16.mxu0 0
    %583 = vmatpush2.bf16.msra.mxu0 0
    %584 = vmatprep.subr.bf16.mxu0 0
    %585 = vmatpush2.bf16.msra.mxu0 0
    %586 = vmatprep.subr.bf16.mxu0 0
    %587 = vmatpush2.bf16.msra.mxu0 0
    %588 = vmatprep.subr.bf16.mxu0 0
    %589 = vmatpush2.bf16.msra.mxu0 0
    %590 = vmatprep.mubr.bf16.mxu0 0
    %591 = vmatmul.mubr.bf16.gmra.mxu0 %v479
    %v592 = vpop.f32.mrf.mxu0
    %v593 = vadd.f32 %v508, %v592
    %v594 = vpop.f32.mrf.mxu0
    %v595 = vpop.f32.mrf.mxu0
    %v596 = vadd.f32 %v508, %v595
    %v597 = vpop.f32.mrf.mxu0
    %598 = vmatprep.mubr.bf16.mxu0 0
    %599 = vmatmul.mubr.bf16.gmra.mxu0 %v480
    %v600 = vpop.f32.mrf.mxu0
    %v601 = vadd.f32 %v508, %v600
    %v602 = vpop.f32.mrf.mxu0
    %v603 = vpop.f32.mrf.mxu0
    %v604 = vadd.f32 %v508, %v603
    %v605 = vpop.f32.mrf.mxu0
    %606 = vmatprep.mubr.bf16.mxu0 0
    %607 = vmatmul.mubr.bf16.gmra.mxu0 %v481
    %v608 = vpop.f32.mrf.mxu0
    %v609 = vadd.f32 %v508, %v608
    %v610 = vpop.f32.mrf.mxu0
    %v611 = vpop.f32.mrf.mxu0
    %v612 = vadd.f32 %v508, %v611
    %v613 = vpop.f32.mrf.mxu0
    %614 = vmatprep.mubr.bf16.mxu0 0
    %615 = vmatmul.mubr.bf16.gmra.mxu0 %v482
    %v616 = vpop.f32.mrf.mxu0
    %v617 = vadd.f32 %v508, %v616
    %v618 = vpop.f32.mrf.mxu0
    %v619 = vpop.f32.mrf.mxu0
    %v620 = vadd.f32 %v508, %v619
    %v621 = vpop.f32.mrf.mxu0
    %622 = vmatprep.mubr.bf16.mxu0 0
    %623 = vmatmul.mubr.bf16.gmra.mxu0 %v483
    %v624 = vpop.f32.mrf.mxu0
    %v625 = vadd.f32 %v508, %v624
    %v626 = vpop.f32.mrf.mxu0
    %v627 = vpop.f32.mrf.mxu0
    %v628 = vadd.f32 %v508, %v627
    %v629 = vpop.f32.mrf.mxu0
    %630 = vmatprep.mubr.bf16.mxu0 0
    %631 = vmatmul.mubr.bf16.gmra.mxu0 %v484
    %v632 = vpop.f32.mrf.mxu0
    %v633 = vadd.f32 %v508, %v632
    %v634 = vpop.f32.mrf.mxu0
    %v635 = vpop.f32.mrf.mxu0
    %v636 = vadd.f32 %v508, %v635
    %v637 = vpop.f32.mrf.mxu0
    %638 = vmatprep.mubr.bf16.mxu0 0
    %639 = vmatmul.mubr.bf16.gmra.mxu0 %v485
    %v640 = vpop.f32.mrf.mxu0
    %v641 = vadd.f32 %v508, %v640
    %v642 = vpop.f32.mrf.mxu0
    %v643 = vpop.f32.mrf.mxu0
    %v644 = vadd.f32 %v508, %v643
    %v645 = vpop.f32.mrf.mxu0
    %646 = vmatprep.mubr.bf16.mxu0 0
    %647 = vmatmul.mubr.bf16.gmra.mxu0 %v486
    %v648 = vpop.f32.mrf.mxu0
    %v649 = vadd.f32 %v508, %v648
    %v650 = vpop.f32.mrf.mxu0
    %v651 = vpop.f32.mrf.mxu0
    %v652 = vadd.f32 %v508, %v651
    %v653 = vpop.f32.mrf.mxu0
    %654 = vdwg.mxu0
    %v655 = vpack.c.bf16 %v596, %v593
    %v656 = vpack.c.bf16 %v604, %v601
    %v657 = vpack.c.bf16 %v612, %v609
    %v658 = vpack.c.bf16 %v620, %v617
    %v659 = vpack.c.bf16 %v628, %v625
    %v660 = vpack.c.bf16 %v636, %v633
    %v661 = vpack.c.bf16 %v644, %v641
    %v662 = vpack.c.bf16 %v652, %v649
    %v663 = vld [vmem:[#allocation10] sm:$0xf]
    %v664 = vld [vmem:[#allocation10 + $0x4] sm:$0xf]
    %v665 = vld [vmem:[#allocation10 + $0x8] sm:$0xf]
    %v666 = vld [vmem:[#allocation10 + $0xc] sm:$0xf]
    %v667 = vld [vmem:[#allocation10 + $0x10] sm:$0xf]
    %v668 = vld [vmem:[#allocation10 + $0x14] sm:$0xf]
    %v669 = vld [vmem:[#allocation10 + $0x18] sm:$0xf]
    %v670 = vld [vmem:[#allocation10 + $0x1c] sm:$0xf]
    %v671 = vld [vmem:[#allocation10 + $0x20] sm:$0xf]
    %v672 = vld [vmem:[#allocation10 + $0x24] sm:$0xf]
    %v673 = vld [vmem:[#allocation10 + $0x28] sm:$0xf]
    %v674 = vld [vmem:[#allocation10 + $0x2c] sm:$0xf]
    %v675 = vld [vmem:[#allocation10 + $0x30] sm:$0xf]
    %v676 = vld [vmem:[#allocation10 + $0x34] sm:$0xf]
    %v677 = vld [vmem:[#allocation10 + $0x38] sm:$0xf]
    %v678 = vld [vmem:[#allocation10 + $0x3c] sm:$0xf]
    %v679 = vld [vmem:[%s8] sm:$0x1]
    %v681 = vlaneseq
    %v682 = vshrl.u32 %v681, 7
    %v683 = vsub.s32 0, %v682
    %v684 = vrot.slane %v679, %v683
    %v702 = vunpack.c.l.b16 %v663
    %v703 = vunpack.c.l.b16 %v664
    %v704 = vunpack.c.l.b16 %v665
    %v705 = vunpack.c.l.b16 %v666
    %v706 = vunpack.c.l.b16 %v667
    %v707 = vunpack.c.l.b16 %v668
    %v708 = vunpack.c.l.b16 %v669
    %v709 = vunpack.c.l.b16 %v670
    %v710 = vunpack.c.l.b16 %v671
    %v711 = vunpack.c.l.b16 %v672
    %v712 = vunpack.c.l.b16 %v673
    %v713 = vunpack.c.l.b16 %v674
    %v714 = vunpack.c.l.b16 %v675
    %v715 = vunpack.c.l.b16 %v676
    %v716 = vunpack.c.l.b16 %v677
    %v717 = vunpack.c.l.b16 %v678
    %v718 = vpack.c.b16 %v703, %v702
    %v719 = vpack.c.b16 %v705, %v704
    %v720 = vpack.c.b16 %v707, %v706
    %v721 = vpack.c.b16 %v709, %v708
    %v722 = vpack.c.b16 %v711, %v710
    %v723 = vpack.c.b16 %v713, %v712
    %v724 = vpack.c.b16 %v715, %v714
    %v725 = vpack.c.b16 %v717, %v716
    %734 = vmatprep.subr.bf16.mxu0 0
    %735 = vmatpush1.bf16.msra.mxu0 %v725
    %736 = vmatprep.subr.bf16.mxu0 0
    %737 = vmatpush1.bf16.msra.mxu0 %v724
    %738 = vmatprep.subr.bf16.mxu0 0
    %739 = vmatpush1.bf16.msra.mxu0 %v723
    %740 = vmatprep.subr.bf16.mxu0 0
    %741 = vmatpush1.bf16.msra.mxu0 %v722
    %742 = vmatprep.subr.bf16.mxu0 0
    %743 = vmatpush1.bf16.msra.mxu0 %v721
    %744 = vmatprep.subr.bf16.mxu0 0
    %745 = vmatpush1.bf16.msra.mxu0 %v720
    %746 = vmatprep.subr.bf16.mxu0 0
    %747 = vmatpush1.bf16.msra.mxu0 %v719
    %748 = vmatprep.subr.bf16.mxu0 0
    %749 = vmatpush1.bf16.msra.mxu0 %v718
    %750 = vmatprep.subr.bf16.mxu0 0
    %751 = vmatpush2.bf16.msra.mxu0 0
    %752 = vmatprep.subr.bf16.mxu0 0
    %753 = vmatpush2.bf16.msra.mxu0 0
    %754 = vmatprep.subr.bf16.mxu0 0
    %755 = vmatpush2.bf16.msra.mxu0 0
    %756 = vmatprep.subr.bf16.mxu0 0
    %757 = vmatpush2.bf16.msra.mxu0 0
    %758 = vmatprep.subr.bf16.mxu0 0
    %759 = vmatpush2.bf16.msra.mxu0 0
    %760 = vmatprep.subr.bf16.mxu0 0
    %761 = vmatpush2.bf16.msra.mxu0 0
    %762 = vmatprep.subr.bf16.mxu0 0
    %763 = vmatpush2.bf16.msra.mxu0 0
    %764 = vmatprep.subr.bf16.mxu0 0
    %765 = vmatpush2.bf16.msra.mxu0 0
    %766 = vmatprep.mubr.bf16.mxu0 0
    %767 = vmatmul.mubr.bf16.gmra.mxu0 %v655
    %v768 = vpop.f32.mrf.mxu0
    %v769 = vadd.f32 %v684, %v768
    %v770 = vpop.f32.mrf.mxu0
    %v771 = vpop.f32.mrf.mxu0
    %v772 = vadd.f32 %v684, %v771
    %v773 = vpop.f32.mrf.mxu0
    %774 = vmatprep.mubr.bf16.mxu0 0
    %775 = vmatmul.mubr.bf16.gmra.mxu0 %v656
    %v776 = vpop.f32.mrf.mxu0
    %v777 = vadd.f32 %v684, %v776
    %v778 = vpop.f32.mrf.mxu0
    %v779 = vpop.f32.mrf.mxu0
    %v780 = vadd.f32 %v684, %v779
    %v781 = vpop.f32.mrf.mxu0
    %782 = vmatprep.mubr.bf16.mxu0 0
    %783 = vmatmul.mubr.bf16.gmra.mxu0 %v657
    %v784 = vpop.f32.mrf.mxu0
    %v785 = vadd.f32 %v684, %v784
    %v786 = vpop.f32.mrf.mxu0
    %v787 = vpop.f32.mrf.mxu0
    %v788 = vadd.f32 %v684, %v787
    %v789 = vpop.f32.mrf.mxu0
    %790 = vmatprep.mubr.bf16.mxu0 0
    %791 = vmatmul.mubr.bf16.gmra.mxu0 %v658
    %v792 = vpop.f32.mrf.mxu0
    %v793 = vadd.f32 %v684, %v792
    %v794 = vpop.f32.mrf.mxu0
    %v795 = vpop.f32.mrf.mxu0
    %v796 = vadd.f32 %v684, %v795
    %v797 = vpop.f32.mrf.mxu0
    %798 = vmatprep.mubr.bf16.mxu0 0
    %799 = vmatmul.mubr.bf16.gmra.mxu0 %v659
    %v800 = vpop.f32.mrf.mxu0
    %v801 = vadd.f32 %v684, %v800
    %v802 = vpop.f32.mrf.mxu0
    %v803 = vpop.f32.mrf.mxu0
    %v804 = vadd.f32 %v684, %v803
    %v805 = vpop.f32.mrf.mxu0
    %806 = vmatprep.mubr.bf16.mxu0 0
    %807 = vmatmul.mubr.bf16.gmra.mxu0 %v660
    %v808 = vpop.f32.mrf.mxu0
    %v809 = vadd.f32 %v684, %v808
    %v810 = vpop.f32.mrf.mxu0
    %v811 = vpop.f32.mrf.mxu0
    %v812 = vadd.f32 %v684, %v811
    %v813 = vpop.f32.mrf.mxu0
    %814 = vmatprep.mubr.bf16.mxu0 0
    %815 = vmatmul.mubr.bf16.gmra.mxu0 %v661
    %v816 = vpop.f32.mrf.mxu0
    %v817 = vadd.f32 %v684, %v816
    %v818 = vpop.f32.mrf.mxu0
    %v819 = vpop.f32.mrf.mxu0
    %v820 = vadd.f32 %v684, %v819
    %v821 = vpop.f32.mrf.mxu0
    %822 = vmatprep.mubr.bf16.mxu0 0
    %823 = vmatmul.mubr.bf16.gmra.mxu0 %v662
    %v824 = vpop.f32.mrf.mxu0
    %v825 = vadd.f32 %v684, %v824
    %v826 = vpop.f32.mrf.mxu0
    %v827 = vpop.f32.mrf.mxu0
    %v828 = vadd.f32 %v684, %v827
    %v829 = vpop.f32.mrf.mxu0
    %830 = vdwg.mxu0
    %831 = vst [vmem:[#allocation11] sm:$0xff] %v769
    %832 = vst [vmem:[#allocation11 + $0x8] sm:$0xff] %v772
    %833 = vst [vmem:[#allocation11 + $0x10] sm:$0xff] %v777
    %834 = vst [vmem:[#allocation11 + $0x18] sm:$0xff] %v780
    %835 = vst [vmem:[#allocation11 + $0x20] sm:$0xff] %v785
    %836 = vst [vmem:[#allocation11 + $0x28] sm:$0xff] %v788
    %837 = vst [vmem:[#allocation11 + $0x30] sm:$0xff] %v793
    %838 = vst [vmem:[#allocation11 + $0x38] sm:$0xff] %v796
    %839 = vst [vmem:[#allocation11 + $0x40] sm:$0xff] %v801
    %840 = vst [vmem:[#allocation11 + $0x48] sm:$0xff] %v804
    %841 = vst [vmem:[#allocation11 + $0x50] sm:$0xff] %v809
    %842 = vst [vmem:[#allocation11 + $0x58] sm:$0xff] %v812
    %843 = vst [vmem:[#allocation11 + $0x60] sm:$0xff] %v817
    %844 = vst [vmem:[#allocation11 + $0x68] sm:$0xff] %v820
    %845 = vst [vmem:[#allocation11 + $0x70] sm:$0xff] %v825
    %846 = vst [vmem:[#allocation11 + $0x78] sm:$0xff] %v828
    // Predicated region
    $region58: #{tpu_custom_call.1} parent=1 // pred_check
      _
    $region59: #{tpu_custom_call.1} parent=1 // pred_check_branch
      %848 = sbr.rel (0) target = $region61
    $region60: #{tpu_custom_call.1} parent=1 // pred_region
      %s850 = ssub.s32 2048, 2048
      %851 = vsyncadd [#allocation4], %s850
      %s852 = sshll.u32 [#allocation11], 4
      %s853 = int_to_ptr.vmem [resolvable:$true] %s852
      %858 = dma.vmem_to_hbm [thread:$0]  %s853, 2048, %s9, [#allocation4], 128, 128, 8
    $region61: #{tpu_custom_call.1} parent=1 // pred_fallthru
      _
    // Predicated region
    $region62: #{tpu_custom_call.1} parent=1 // pred_check
      _
    $region63: #{tpu_custom_call.1} parent=1 // pred_check_branch
      %860 = sbr.rel (0) target = $region65
    $region64: #{tpu_custom_call.1} parent=1 // pred_region
      %861 = dma.done [#allocation4], 2048
    $region65: #{tpu_custom_call.1} parent=1 // pred_fallthru
      _
    %862 = vsyncpa [#allocation3], 1
    %863 = vsyncpa [#allocation6], 1
    %864 = vsyncpa [#allocation9], 1
    %865 = vsyncpa [#allocation4], 1

</llo_original>
